<compile_context>
chip_gen: v7x
topology: tpu7x:2x2x1
jax: 0.10.0
libtpu: 0.0.40
codegen_flags: <defaults>
</compile_context>

<pallas_src>
import functools

import jax
import jax.numpy as jnp
from jax.experimental import pallas as pl
from jax.experimental.pallas import tpu as pltpu


# -----------------------------------------------------------------------------
# Generation-aware VMEM budget / vocab-tile selection.
# -----------------------------------------------------------------------------
def _vmem_budget():
    """Returns (vmem_limit_bytes, max vocab-tile width) for this TPU generation."""
    cap = 64 * 1024 * 1024  # conservative default (v7x per-TC VMEM)
    try:
        cap = int(pltpu.get_tpu_info().vmem_capacity_bytes)
    except Exception:
        pass
    if cap >= 100 * 1024 * 1024:          # v5e / v6e: 128 MiB physical VMEM
        return 100 * 1024 * 1024, 8192
    return 56 * 1024 * 1024, 4096         # v7x: 64 MiB per TensorCore


def _pick_vocab_tile(v_pad, cap):
    """Largest 128-aligned divisor of v_pad that is <= cap."""
    best = 128
    t = 128
    while t <= min(cap, v_pad):
        if v_pad % t == 0:
            best = t
        t += 128
    return best


# -----------------------------------------------------------------------------
# Kernel 1: keyed GRU recurrent step (grid-less: every weight DMA'd exactly
# once, single-buffered; ~19.5 MiB resident bf16 weights at prod shapes).
# -----------------------------------------------------------------------------
def keyed_gru_step_kernel(
    emb_ref, h_ref, kemb_ref, kh_ref,
    w_ih_ref, w_hh_ref, b_ih_ref, b_hh_ref,
    kw_ihg_ref, kw_hh_ref, kb_ih_ref, kb_hh_ref,
    u_gk_ref, b_gk_ref,
    dec_h_ref, dec_h_bf16_ref, key_h_ref,
):
    H = h_ref.shape[-1]

    # ---- decoder GRU cell (torch.nn.GRUCell semantics): bf16 weights,
    #      f32 MXU accumulation, f32 gate math ----
    emb = emb_ref[...].astype(jnp.bfloat16)
    h = h_ref[...]                                              # f32 state
    gi = jnp.dot(emb, w_ih_ref[...],
                 preferred_element_type=jnp.float32) + b_ih_ref[...]
    gh = jnp.dot(h.astype(jnp.bfloat16), w_hh_ref[...],
                 preferred_element_type=jnp.float32) + b_hh_ref[...]
    # consume r/z before forming n to limit live vregs at prod H
    r = jax.nn.sigmoid(gi[:, 0:H] + gh[:, 0:H])
    z = jax.nn.sigmoid(gi[:, H:2 * H] + gh[:, H:2 * H])
    n = jnp.tanh(gi[:, 2 * H:3 * H] + r * gh[:, 2 * H:3 * H])
    h_new = (1.0 - z) * n + z * h

    # ---- key GRU cell; kemb hits ONE fused (E, 4H) weight:
    #      [:, :3H] = key-GRU input proj, [:, 3H:] = key-gate kemb term ----
    kemb = kemb_ref[...].astype(jnp.bfloat16)
    kh = kh_ref[...]
    kgi_all = jnp.dot(kemb, kw_ihg_ref[...], preferred_element_type=jnp.float32)
    kgh = jnp.dot(kh.astype(jnp.bfloat16), kw_hh_ref[...],
                  preferred_element_type=jnp.float32) + kb_hh_ref[...]
    kgi = kgi_all[:, 0:3 * H] + kb_ih_ref[...]
    kr = jax.nn.sigmoid(kgi[:, 0:H] + kgh[:, 0:H])
    kz = jax.nn.sigmoid(kgi[:, H:2 * H] + kgh[:, H:2 * H])
    kn = jnp.tanh(kgi[:, 2 * H:3 * H] + kr * kgh[:, 2 * H:3 * H])
    kh_new = (1.0 - kz) * kn + kz * kh

    # ---- key gate modulating the decoder hidden state (assumed formula) ----
    g = jax.nn.sigmoid(
        kgi_all[:, 3 * H:4 * H]
        + jnp.dot(kh_new.astype(jnp.bfloat16), u_gk_ref[...],
                  preferred_element_type=jnp.float32)
        + b_gk_ref[...]
    )                                                           # (1, H)

    dec_h = g * h_new                                           # (B, H) f32
    dec_h_ref[...] = dec_h
    dec_h_bf16_ref[...] = dec_h.astype(jnp.bfloat16)            # classifier feed
    key_h_ref[...] = kh_new


# -----------------------------------------------------------------------------
# Kernel 2: vocab-tiled classifier.  Grid axis 0 = vocab tile; every iteration
# is independent ("parallel" -> shardable across v7x's two TensorCores).
# Padded columns (>= v_true) are masked to -1e30 so the external logZ reduce
# sees only the real vocabulary.
# -----------------------------------------------------------------------------
def classifier_vocab_tile_kernel(dec_h_ref, w_cls_ref, b_cls_ref, logits_ref,
                                 *, v_true):
    j = pl.program_id(0)
    tv = w_cls_ref.shape[-1]
    logits = (
        jnp.dot(dec_h_ref[...], w_cls_ref[...],
                preferred_element_type=jnp.float32)
        + b_cls_ref[...]
    )
    col = j * tv + jax.lax.broadcasted_iota(jnp.int32, logits.shape, 1)
    logits_ref[...] = jnp.where(col < v_true, logits, jnp.float32(-1e30))


# -----------------------------------------------------------------------------
# Single decode step: recurrent kernel + vocab-tiled classifier kernel.
# -----------------------------------------------------------------------------
def keyed_decoder_step(emb, h, kemb, kh, p, *, v_true, tv=None):
    B, H = h.shape
    V_pad = p["w_cls"].shape[1]
    assert V_pad % 128 == 0, "pad the classifier vocab to a multiple of 128"

    vmem_limit, tv_cap = _vmem_budget()
    if tv is None:
        tv = _pick_vocab_tile(V_pad, tv_cap)
    assert tv % 128 == 0 and V_pad % tv == 0, "tile must be 128-aligned and divide V_pad"
    nt = V_pad // tv

    # --- keyed GRU recurrent step (no grid -> no pipelining, weights loaded
    #     once, single-buffered) ---
    dec_h, dec_h_bf16, key_h_new = pl.pallas_call(
        keyed_gru_step_kernel,
        out_shape=(
            jax.ShapeDtypeStruct((B, H), jnp.float32),          # new decoder hidden
            jax.ShapeDtypeStruct((B, H), jnp.bfloat16),         # classifier input
            jax.ShapeDtypeStruct((kh.shape[0], H), jnp.float32),  # new key hidden
        ),
        compiler_params=pltpu.CompilerParams(vmem_limit_bytes=vmem_limit),
    )(emb, h, kemb, kh,
      p["w_ih"], p["w_hh"], p["b_ih"], p["b_hh"],
      p["kw_ihg"], p["kw_hh"], p["kb_ih"], p["kb_hh"],
      p["u_gk"], p["b_gk"])

    # --- classifier: streamed w_cls tiles (double-buffered), lane-dense raw
    #     logits per tile; dec_h is a ~4 KB constant-index block (re-DMA cost
    #     negligible; Pallas skips the copy when the block index is unchanged).
    logits = pl.pallas_call(
        functools.partial(classifier_vocab_tile_kernel, v_true=v_true),
        out_shape=jax.ShapeDtypeStruct((B, V_pad), jnp.float32),
        grid=(nt,),
        in_specs=[
            pl.BlockSpec((B, H), lambda j: (0, 0)),             # dec_hidden (bf16)
            pl.BlockSpec((H, tv), lambda j: (0, j)),            # w_cls vocab tile (bf16)
            pl.BlockSpec((1, tv), lambda j: (0, j)),            # b_cls vocab tile
        ],
        out_specs=pl.BlockSpec((B, tv), lambda j: (0, j)),      # lane-dense stores
        compiler_params=pltpu.CompilerParams(
            dimension_semantics=("parallel",),                  # 2-TC split on v7x
            vmem_limit_bytes=vmem_limit,
        ),
    )(dec_h_bf16, p["w_cls"], p["b_cls"])

    return logits, dec_h, key_h_new


# -----------------------------------------------------------------------------
# Python wrapper = KeyedDecoder.forward(x, hidden, use_key=True, key_hidden, t)
# -----------------------------------------------------------------------------
@functools.partial(jax.jit, static_argnames=("v_true", "tv"))
def keyed_decoder_forward(params, x, hidden, key_hidden, timestep, *, v_true, tv=None):
    # embedding lookups (plain JAX gathers); dropout is eval-mode identity
    embedded = params["emb_table"][x]                        # (B, E)
    key_id = params["key_ids"][0, timestep]                  # traced scalar
    key_emb_t = params["emb_table"][key_id][None, :]         # (1, E) — only the needed row

    logits, dec_hidden, key_hidden_new = keyed_decoder_step(
        embedded, hidden, key_emb_t, key_hidden, params, v_true=v_true, tv=tv)

    # tiny XLA follow-up: logZ reduce over masked raw logits, normalize, drop pads
    m = jnp.max(logits, axis=1, keepdims=True)
    logz = m + jnp.log(jnp.sum(jnp.exp(logits - m), axis=1, keepdims=True))
    output = (logits - logz)[:, :v_true]                     # LogSoftmax(dim=1)
    return output, dec_hidden, key_hidden_new


# -----------------------------------------------------------------------------
# Pure-JAX reference (same bf16 weights, f32 math) for correctness checking.
# -----------------------------------------------------------------------------
def reference_forward(params, x, hidden, key_hidden, timestep, v_true):
    H = hidden.shape[-1]
    f32 = lambda a: a.astype(jnp.float32)
    bf = lambda a: a.astype(jnp.bfloat16).astype(jnp.float32)

    emb = params["emb_table"][x]
    key_id = params["key_ids"][0, timestep]
    kemb = params["emb_table"][key_id][None, :]

    gi = bf(emb) @ f32(params["w_ih"]) + params["b_ih"]
    gh = bf(hidden) @ f32(params["w_hh"]) + params["b_hh"]
    r = jax.nn.sigmoid(gi[:, :H] + gh[:, :H])
    z = jax.nn.sigmoid(gi[:, H:2 * H] + gh[:, H:2 * H])
    n = jnp.tanh(gi[:, 2 * H:3 * H] + r * gh[:, 2 * H:3 * H])
    h_new = (1.0 - z) * n + z * hidden

    kgi_all = bf(kemb) @ f32(params["kw_ihg"])
    kgh = bf(key_hidden) @ f32(params["kw_hh"]) + params["kb_hh"]
    kgi = kgi_all[:, :3 * H] + params["kb_ih"]
    kr = jax.nn.sigmoid(kgi[:, :H] + kgh[:, :H])
    kz = jax.nn.sigmoid(kgi[:, H:2 * H] + kgh[:, H:2 * H])
    kn = jnp.tanh(kgi[:, 2 * H:3 * H] + kr * kgh[:, 2 * H:3 * H])
    kh_new = (1.0 - kz) * kn + kz * key_hidden

    g = jax.nn.sigmoid(kgi_all[:, 3 * H:] + bf(kh_new) @ f32(params["u_gk"])
                       + params["b_gk"])
    dec_h = g * h_new

    logits = bf(dec_h) @ f32(params["w_cls"]) + params["b_cls"]
    out = jax.nn.log_softmax(logits[:, :v_true], axis=1)
    return out, dec_h, kh_new


# -----------------------------------------------------------------------------
# Parameter construction (bf16 weights, zero-padded classifier vocab).
# -----------------------------------------------------------------------------
def init_params(key, *, num_words, embedding_dim, hidden_dim, key_len,
                num_words_padded=None, pad_idx=1):
    if num_words_padded is None:
        num_words_padded = ((num_words + 127) // 128) * 128
    assert num_words_padded % 128 == 0 and num_words_padded >= num_words

    ks = jax.random.split(key, 10)
    scale = 0.05

    emb_table = scale * jax.random.normal(ks[0], (num_words, embedding_dim), jnp.float32)
    emb_table = emb_table.at[pad_idx].set(0.0)                # padding_idx row is zero

    def w(k, shape):
        # weights stored bf16 (HBM/VMEM halved); matmuls accumulate in f32
        return (scale * jax.random.normal(k, shape, jnp.float32)).astype(jnp.bfloat16)

    kw_ih = w(ks[4], (embedding_dim, 3 * hidden_dim))         # key GRU input proj
    w_gk = w(ks[6], (embedding_dim, hidden_dim))              # key-gate kemb term

    w_cls = w(ks[8], (hidden_dim, num_words))
    w_cls = jnp.pad(w_cls, ((0, 0), (0, num_words_padded - num_words)))
    b_cls = jnp.zeros((1, num_words_padded), jnp.float32)     # pads masked in-kernel

    return dict(
        emb_table=emb_table,
        key_ids=jax.random.randint(ks[1], (1, key_len), 0, num_words),
        # decoder GRU cell
        w_ih=w(ks[2], (embedding_dim, 3 * hidden_dim)),
        w_hh=w(ks[3], (hidden_dim, 3 * hidden_dim)),
        b_ih=jnp.zeros((1, 3 * hidden_dim), jnp.float32),
        b_hh=jnp.zeros((1, 3 * hidden_dim), jnp.float32),
        # key GRU cell: fused (E, 4H) = [kw_ih | w_gk] -> one kemb matmul
        kw_ihg=jnp.concatenate([kw_ih, w_gk], axis=1),
        kw_hh=w(ks[5], (hidden_dim, 3 * hidden_dim)),
        kb_ih=jnp.zeros((1, 3 * hidden_dim), jnp.float32),
        kb_hh=jnp.zeros((1, 3 * hidden_dim), jnp.float32),
        # key gate (hidden term + bias)
        u_gk=w(ks[7], (hidden_dim, hidden_dim)),
        b_gk=jnp.zeros((1, hidden_dim), jnp.float32),
        # classifier (padded to a 128-multiple vocab; masked in-kernel)
        w_cls=w_cls,
        b_cls=b_cls,
    )


if __name__ == "__main__":
    # small, TPU-friendly demo shapes consistent with the module's forward
    B = 8            # batch >= 8 fills all sublanes (prod: beam/multi-seq batching)
    E = 128          # embedding_dim (prod 300 -> pad to 384)
    H = 128          # hidden_dim    (prod 1024)
    V_TRUE = 500     # num_words_outputs (prod 15000)
    V_PAD = 512      # padded vocab      (prod 15000 -> 15360)
    KEY_LEN = 15     # matches torch.randint(0, num_words, (1, 15)) default key

    root = jax.random.PRNGKey(0)
    k_params, kx, kh = jax.random.split(root, 3)
    params = init_params(k_params, num_words=V_TRUE, num_words_padded=V_PAD,
                         embedding_dim=E, hidden_dim=H, key_len=KEY_LEN, pad_idx=1)

    x = jax.random.randint(kx, (B,), 0, V_TRUE)                    # token ids
    hidden = 0.1 * jax.random.normal(kh, (B, H), jnp.float32)      # init decoder hidden
    key_hidden = jnp.zeros((1, H), jnp.float32)                    # key GRU hidden

    # --- step 0: auto-picked (generation-aware) vocab tile ---
    output, dec_hidden, key_hidden_new = keyed_decoder_forward(
        params, x, hidden, key_hidden, jnp.int32(0), v_true=V_TRUE)
    jax.block_until_ready((output, dec_hidden, key_hidden_new))

    assert output.shape == (B, V_TRUE)
    assert dec_hidden.shape == (B, H)
    assert key_hidden_new.shape == (1, H)
    assert bool(jnp.all(jnp.isfinite(output)))
    # log-softmax rows over the TRUE vocab must exp-sum to ~1 (pad-masking check)
    assert bool(jnp.all(jnp.abs(jnp.sum(jnp.exp(output), axis=1) - 1.0) < 1e-3))

    ref_out, ref_dec, ref_kh = reference_forward(params, x, hidden, key_hidden, 0, V_TRUE)
    assert bool(jnp.allclose(output, ref_out, atol=2e-2, rtol=2e-2))
    assert bool(jnp.allclose(dec_hidden, ref_dec, atol=2e-2, rtol=2e-2))
    assert bool(jnp.allclose(key_hidden_new, ref_kh, atol=2e-2, rtol=2e-2))

    # --- step 1: explicit small tile to exercise the multi-tile grid + masking
    #     of the partially-padded last tile (prod uses the auto tile, 3840+) ---
    out2, dec2, keyh2 = keyed_decoder_forward(
        params, x, dec_hidden, key_hidden_new, jnp.int32(1), v_true=V_TRUE, tv=128)
    jax.block_until_ready((out2, dec2, keyh2))
    assert out2.shape == (B, V_TRUE)
    ref_out2, ref_dec2, ref_kh2 = reference_forward(
        params, x, dec_hidden, key_hidden_new, 1, V_TRUE)
    assert bool(jnp.allclose(out2, ref_out2, atol=2e-2, rtol=2e-2))
    assert bool(jnp.allclose(dec2, ref_dec2, atol=2e-2, rtol=2e-2))
    assert bool(jnp.allclose(keyh2, ref_kh2, atol=2e-2, rtol=2e-2))

    print("KERNEL_OK")
</pallas_src>

<mosaic_0001>
module attributes {stable_mosaic.version = 11 : i64} {
  func.func @keyed_gru_step_kernel(%arg0: memref<8x128xf32, #tpu.memory_space<vmem>>, %arg1: memref<8x128xf32, #tpu.memory_space<vmem>>, %arg2: memref<1x128xf32, #tpu.memory_space<vmem>>, %arg3: memref<1x128xf32, #tpu.memory_space<vmem>>, %arg4: memref<128x384xbf16, #tpu.memory_space<vmem>>, %arg5: memref<128x384xbf16, #tpu.memory_space<vmem>>, %arg6: memref<1x384xf32, #tpu.memory_space<vmem>>, %arg7: memref<1x384xf32, #tpu.memory_space<vmem>>, %arg8: memref<128x512xbf16, #tpu.memory_space<vmem>>, %arg9: memref<128x384xbf16, #tpu.memory_space<vmem>>, %arg10: memref<1x384xf32, #tpu.memory_space<vmem>>, %arg11: memref<1x384xf32, #tpu.memory_space<vmem>>, %arg12: memref<128x128xbf16, #tpu.memory_space<vmem>>, %arg13: memref<1x128xf32, #tpu.memory_space<vmem>>, %arg14: memref<8x128xf32, #tpu.memory_space<vmem>>, %arg15: memref<8x128xbf16, #tpu.memory_space<vmem>>, %arg16: memref<1x128xf32, #tpu.memory_space<vmem>>) attributes {dimension_semantics = [], scalar_prefetch = 0 : i64, scratch_operands = 0 : i64, tpu.core_type = #tpu.core_type<tc>} {
    %c0 = arith.constant 0 : index
    %c0_0 = arith.constant 0 : index
    %0 = vector.load %arg0[%c0, %c0_0] : memref<8x128xf32, #tpu.memory_space<vmem>>, vector<8x128xf32>
    %1 = arith.truncf %0 : vector<8x128xf32> to vector<8x128xbf16>
    %c0_1 = arith.constant 0 : index
    %c0_2 = arith.constant 0 : index
    %2 = vector.load %arg1[%c0_1, %c0_2] : memref<8x128xf32, #tpu.memory_space<vmem>>, vector<8x128xf32>
    %c0_3 = arith.constant 0 : index
    %c0_4 = arith.constant 0 : index
    %3 = vector.load %arg4[%c0_3, %c0_4] : memref<128x384xbf16, #tpu.memory_space<vmem>>, vector<128x384xbf16>
    %cst = arith.constant dense<0.000000e+00> : vector<8x384xf32>
    %4 = tpu.matmul %1, %3, %cst {dimension_numbers = #tpu.dot_dimension_numbers<[1], [0], [0], [1], [0, 0, 1, 1], [], []>} : vector<8x128xbf16>, vector<128x384xbf16>, vector<8x384xf32> -> vector<8x384xf32>
    %c0_5 = arith.constant 0 : index
    %c0_6 = arith.constant 0 : index
    %5 = vector.load %arg6[%c0_5, %c0_6] : memref<1x384xf32, #tpu.memory_space<vmem>>, vector<1x384xf32>
    %6 = vector.broadcast %5 : vector<1x384xf32> to vector<8x384xf32>
    %7 = arith.addf %4, %6 : vector<8x384xf32>
    %8 = arith.truncf %2 : vector<8x128xf32> to vector<8x128xbf16>
    %c0_7 = arith.constant 0 : index
    %c0_8 = arith.constant 0 : index
    %9 = vector.load %arg5[%c0_7, %c0_8] : memref<128x384xbf16, #tpu.memory_space<vmem>>, vector<128x384xbf16>
    %cst_9 = arith.constant dense<0.000000e+00> : vector<8x384xf32>
    %10 = tpu.matmul %8, %9, %cst_9 {dimension_numbers = #tpu.dot_dimension_numbers<[1], [0], [0], [1], [0, 0, 1, 1], [], []>} : vector<8x128xbf16>, vector<128x384xbf16>, vector<8x384xf32> -> vector<8x384xf32>
    %c0_10 = arith.constant 0 : index
    %c0_11 = arith.constant 0 : index
    %11 = vector.load %arg7[%c0_10, %c0_11] : memref<1x384xf32, #tpu.memory_space<vmem>>, vector<1x384xf32>
    %12 = vector.broadcast %11 : vector<1x384xf32> to vector<8x384xf32>
    %13 = arith.addf %10, %12 : vector<8x384xf32>
    %14 = vector.extract_strided_slice %7 {offsets = [0, 0], sizes = [8, 128], strides = [1, 1]} : vector<8x384xf32> to vector<8x128xf32>
    %15 = vector.extract_strided_slice %13 {offsets = [0, 0], sizes = [8, 128], strides = [1, 1]} : vector<8x384xf32> to vector<8x128xf32>
    %16 = arith.addf %14, %15 : vector<8x128xf32>
    %17 = arith.negf %16 : vector<8x128xf32>
    %18 = math.exp %17 : vector<8x128xf32>
    %cst_12 = arith.constant 1.000000e+00 : f32
    %19 = vector.broadcast %cst_12 : f32 to vector<8x128xf32>
    %20 = arith.addf %19, %18 : vector<8x128xf32>
    %21 = arith.divf %19, %20 : vector<8x128xf32>
    %22 = vector.extract_strided_slice %7 {offsets = [0, 128], sizes = [8, 128], strides = [1, 1]} : vector<8x384xf32> to vector<8x128xf32>
    %23 = vector.extract_strided_slice %13 {offsets = [0, 128], sizes = [8, 128], strides = [1, 1]} : vector<8x384xf32> to vector<8x128xf32>
    %24 = arith.addf %22, %23 : vector<8x128xf32>
    %25 = arith.negf %24 : vector<8x128xf32>
    %26 = math.exp %25 : vector<8x128xf32>
    %cst_13 = arith.constant 1.000000e+00 : f32
    %27 = vector.broadcast %cst_13 : f32 to vector<8x128xf32>
    %28 = arith.addf %27, %26 : vector<8x128xf32>
    %29 = arith.divf %27, %28 : vector<8x128xf32>
    %30 = vector.extract_strided_slice %7 {offsets = [0, 256], sizes = [8, 128], strides = [1, 1]} : vector<8x384xf32> to vector<8x128xf32>
    %31 = vector.extract_strided_slice %13 {offsets = [0, 256], sizes = [8, 128], strides = [1, 1]} : vector<8x384xf32> to vector<8x128xf32>
    %32 = arith.mulf %21, %31 : vector<8x128xf32>
    %33 = arith.addf %30, %32 : vector<8x128xf32>
    %34 = math.tanh %33 : vector<8x128xf32>
    %cst_14 = arith.constant 1.000000e+00 : f32
    %35 = vector.broadcast %cst_14 : f32 to vector<8x128xf32>
    %36 = arith.subf %35, %29 : vector<8x128xf32>
    %37 = arith.mulf %36, %34 : vector<8x128xf32>
    %38 = arith.mulf %29, %2 : vector<8x128xf32>
    %39 = arith.addf %37, %38 : vector<8x128xf32>
    %c0_15 = arith.constant 0 : index
    %c0_16 = arith.constant 0 : index
    %40 = vector.load %arg2[%c0_15, %c0_16] : memref<1x128xf32, #tpu.memory_space<vmem>>, vector<1x128xf32>
    %41 = arith.truncf %40 : vector<1x128xf32> to vector<1x128xbf16>
    %c0_17 = arith.constant 0 : index
    %c0_18 = arith.constant 0 : index
    %42 = vector.load %arg3[%c0_17, %c0_18] : memref<1x128xf32, #tpu.memory_space<vmem>>, vector<1x128xf32>
    %c0_19 = arith.constant 0 : index
    %c0_20 = arith.constant 0 : index
    %43 = vector.load %arg8[%c0_19, %c0_20] : memref<128x512xbf16, #tpu.memory_space<vmem>>, vector<128x512xbf16>
    %cst_21 = arith.constant dense<0.000000e+00> : vector<1x512xf32>
    %44 = tpu.matmul %41, %43, %cst_21 {dimension_numbers = #tpu.dot_dimension_numbers<[1], [0], [0], [1], [0, 0, 1, 1], [], []>} : vector<1x128xbf16>, vector<128x512xbf16>, vector<1x512xf32> -> vector<1x512xf32>
    %45 = arith.truncf %42 : vector<1x128xf32> to vector<1x128xbf16>
    %c0_22 = arith.constant 0 : index
    %c0_23 = arith.constant 0 : index
    %46 = vector.load %arg9[%c0_22, %c0_23] : memref<128x384xbf16, #tpu.memory_space<vmem>>, vector<128x384xbf16>
    %cst_24 = arith.constant dense<0.000000e+00> : vector<1x384xf32>
    %47 = tpu.matmul %45, %46, %cst_24 {dimension_numbers = #tpu.dot_dimension_numbers<[1], [0], [0], [1], [0, 0, 1, 1], [], []>} : vector<1x128xbf16>, vector<128x384xbf16>, vector<1x384xf32> -> vector<1x384xf32>
    %c0_25 = arith.constant 0 : index
    %c0_26 = arith.constant 0 : index
    %48 = vector.load %arg11[%c0_25, %c0_26] : memref<1x384xf32, #tpu.memory_space<vmem>>, vector<1x384xf32>
    %49 = arith.addf %47, %48 : vector<1x384xf32>
    %50 = vector.extract_strided_slice %44 {offsets = [0, 0], sizes = [1, 384], strides = [1, 1]} : vector<1x512xf32> to vector<1x384xf32>
    %c0_27 = arith.constant 0 : index
    %c0_28 = arith.constant 0 : index
    %51 = vector.load %arg10[%c0_27, %c0_28] : memref<1x384xf32, #tpu.memory_space<vmem>>, vector<1x384xf32>
    %52 = arith.addf %50, %51 : vector<1x384xf32>
    %53 = vector.extract_strided_slice %52 {offsets = [0, 0], sizes = [1, 128], strides = [1, 1]} : vector<1x384xf32> to vector<1x128xf32>
    %54 = vector.extract_strided_slice %49 {offsets = [0, 0], sizes = [1, 128], strides = [1, 1]} : vector<1x384xf32> to vector<1x128xf32>
    %55 = arith.addf %53, %54 : vector<1x128xf32>
    %56 = arith.negf %55 : vector<1x128xf32>
    %57 = math.exp %56 : vector<1x128xf32>
    %cst_29 = arith.constant 1.000000e+00 : f32
    %58 = vector.broadcast %cst_29 : f32 to vector<1x128xf32>
    %59 = arith.addf %58, %57 : vector<1x128xf32>
    %60 = arith.divf %58, %59 : vector<1x128xf32>
    %61 = vector.extract_strided_slice %52 {offsets = [0, 128], sizes = [1, 128], strides = [1, 1]} : vector<1x384xf32> to vector<1x128xf32>
    %62 = vector.extract_strided_slice %49 {offsets = [0, 128], sizes = [1, 128], strides = [1, 1]} : vector<1x384xf32> to vector<1x128xf32>
    %63 = arith.addf %61, %62 : vector<1x128xf32>
    %64 = arith.negf %63 : vector<1x128xf32>
    %65 = math.exp %64 : vector<1x128xf32>
    %cst_30 = arith.constant 1.000000e+00 : f32
    %66 = vector.broadcast %cst_30 : f32 to vector<1x128xf32>
    %67 = arith.addf %66, %65 : vector<1x128xf32>
    %68 = arith.divf %66, %67 : vector<1x128xf32>
    %69 = vector.extract_strided_slice %52 {offsets = [0, 256], sizes = [1, 128], strides = [1, 1]} : vector<1x384xf32> to vector<1x128xf32>
    %70 = vector.extract_strided_slice %49 {offsets = [0, 256], sizes = [1, 128], strides = [1, 1]} : vector<1x384xf32> to vector<1x128xf32>
    %71 = arith.mulf %60, %70 : vector<1x128xf32>
    %72 = arith.addf %69, %71 : vector<1x128xf32>
    %73 = math.tanh %72 : vector<1x128xf32>
    %cst_31 = arith.constant 1.000000e+00 : f32
    %74 = vector.broadcast %cst_31 : f32 to vector<1x128xf32>
    %75 = arith.subf %74, %68 : vector<1x128xf32>
    %76 = arith.mulf %75, %73 : vector<1x128xf32>
    %77 = arith.mulf %68, %42 : vector<1x128xf32>
    %78 = arith.addf %76, %77 : vector<1x128xf32>
    %79 = vector.extract_strided_slice %44 {offsets = [0, 384], sizes = [1, 128], strides = [1, 1]} : vector<1x512xf32> to vector<1x128xf32>
    %80 = arith.truncf %78 : vector<1x128xf32> to vector<1x128xbf16>
    %c0_32 = arith.constant 0 : index
    %c0_33 = arith.constant 0 : index
    %81 = vector.load %arg12[%c0_32, %c0_33] : memref<128x128xbf16, #tpu.memory_space<vmem>>, vector<128x128xbf16>
    %cst_34 = arith.constant dense<0.000000e+00> : vector<1x128xf32>
    %82 = tpu.matmul %80, %81, %cst_34 {dimension_numbers = #tpu.dot_dimension_numbers<[1], [0], [0], [1], [0, 0, 1, 1], [], []>} : vector<1x128xbf16>, vector<128x128xbf16>, vector<1x128xf32> -> vector<1x128xf32>
    %83 = arith.addf %79, %82 : vector<1x128xf32>
    %c0_35 = arith.constant 0 : index
    %c0_36 = arith.constant 0 : index
    %84 = vector.load %arg13[%c0_35, %c0_36] : memref<1x128xf32, #tpu.memory_space<vmem>>, vector<1x128xf32>
    %85 = arith.addf %83, %84 : vector<1x128xf32>
    %86 = arith.negf %85 : vector<1x128xf32>
    %87 = math.exp %86 : vector<1x128xf32>
    %cst_37 = arith.constant 1.000000e+00 : f32
    %88 = vector.broadcast %cst_37 : f32 to vector<1x128xf32>
    %89 = arith.addf %88, %87 : vector<1x128xf32>
    %90 = arith.divf %88, %89 : vector<1x128xf32>
    %91 = vector.broadcast %90 : vector<1x128xf32> to vector<8x128xf32>
    %92 = arith.mulf %91, %39 : vector<8x128xf32>
    %c0_38 = arith.constant 0 : index
    %c0_39 = arith.constant 0 : index
    %93 = vector.load %arg14[%c0_38, %c0_39] : memref<8x128xf32, #tpu.memory_space<vmem>>, vector<8x128xf32>
    tpu.vector_store %arg14[%c0_38, %c0_39], %92 {strides = array<i32>} : memref<8x128xf32, #tpu.memory_space<vmem>>, vector<8x128xf32>,
    %94 = arith.truncf %92 : vector<8x128xf32> to vector<8x128xbf16>
    %c0_40 = arith.constant 0 : index
    %c0_41 = arith.constant 0 : index
    %95 = vector.load %arg15[%c0_40, %c0_41] : memref<8x128xbf16, #tpu.memory_space<vmem>>, vector<8x128xbf16>
    tpu.vector_store %arg15[%c0_40, %c0_41], %94 {strides = array<i32>} : memref<8x128xbf16, #tpu.memory_space<vmem>>, vector<8x128xbf16>,
    %c0_42 = arith.constant 0 : index
    %c0_43 = arith.constant 0 : index
    %96 = vector.load %arg16[%c0_42, %c0_43] : memref<1x128xf32, #tpu.memory_space<vmem>>, vector<1x128xf32>
    tpu.vector_store %arg16[%c0_42, %c0_43], %78 {strides = array<i32>} : memref<1x128xf32, #tpu.memory_space<vmem>>, vector<1x128xf32>,
    return
  }
}

module attributes {stable_mosaic.version = 11 : i64} {
  func.func @classifier_vocab_tile_kernel(%arg0: i32, %arg1: memref<8x128xbf16, #tpu.memory_space<vmem>>, %arg2: memref<128x512xbf16, #tpu.memory_space<vmem>>, %arg3: memref<1x512xf32, #tpu.memory_space<vmem>>, %arg4: memref<8x512xf32, #tpu.memory_space<vmem>>) attributes {dimension_semantics = [#tpu.dimension_semantics<parallel>], iteration_bounds = array<i64: 1>, scalar_prefetch = 0 : i64, scratch_operands = 0 : i64, tpu.core_type = #tpu.core_type<tc>, window_params = [{pipeline_mode = #tpu.pipeline_mode<synchronous>, transform_indices = @transform_0, window_bounds = array<i64: 8, 128>}, {transform_indices = @transform_1, window_bounds = array<i64: 128, 512>}, {transform_indices = @transform_2, window_bounds = array<i64: 1, 512>}, {transform_indices = @transform_3, window_bounds = array<i64: 8, 512>}]} {
    %c0 = arith.constant 0 : index
    %c0_0 = arith.constant 0 : index
    %0 = vector.load %arg1[%c0, %c0_0] : memref<8x128xbf16, #tpu.memory_space<vmem>>, vector<8x128xbf16>
    %c0_1 = arith.constant 0 : index
    %c0_2 = arith.constant 0 : index
    %1 = vector.load %arg2[%c0_1, %c0_2] : memref<128x512xbf16, #tpu.memory_space<vmem>>, vector<128x512xbf16>
    %cst = arith.constant dense<0.000000e+00> : vector<8x512xf32>
    %2 = tpu.matmul %0, %1, %cst {dimension_numbers = #tpu.dot_dimension_numbers<[1], [0], [0], [1], [0, 0, 1, 1], [], []>} : vector<8x128xbf16>, vector<128x512xbf16>, vector<8x512xf32> -> vector<8x512xf32>
    %c0_3 = arith.constant 0 : index
    %c0_4 = arith.constant 0 : index
    %3 = vector.load %arg3[%c0_3, %c0_4] : memref<1x512xf32, #tpu.memory_space<vmem>>, vector<1x512xf32>
    %4 = vector.broadcast %3 : vector<1x512xf32> to vector<8x512xf32>
    %5 = arith.addf %2, %4 : vector<8x512xf32>
    %c512_i32 = arith.constant 512 : i32
    %6 = arith.muli %arg0, %c512_i32 : i32
    %7 = tpu.iota {dimensions = array<i32: 1>} : vector<8x512xi32>
    %8 = vector.broadcast %6 : i32 to vector<8x512xi32>
    %9 = arith.addi %8, %7 : vector<8x512xi32>
    %c500_i32 = arith.constant 500 : i32
    %10 = vector.broadcast %c500_i32 : i32 to vector<8x512xi32>
    %11 = arith.cmpi slt, %9, %10 : vector<8x512xi32>
    %cst_5 = arith.constant -1.000000e+30 : f32
    %12 = vector.broadcast %cst_5 : f32 to vector<8x512xf32>
    %13 = arith.select %11, %5, %12 : vector<8x512xi1>, vector<8x512xf32>
    %c0_6 = arith.constant 0 : index
    %c0_7 = arith.constant 0 : index
    %14 = vector.load %arg4[%c0_6, %c0_7] : memref<8x512xf32, #tpu.memory_space<vmem>>, vector<8x512xf32>
    tpu.vector_store %arg4[%c0_6, %c0_7], %13 {strides = array<i32>} : memref<8x512xf32, #tpu.memory_space<vmem>>, vector<8x512xf32>,
    return
  }
  func.func @transform_0(%arg0: i32) -> (i32, i32) {
    %c0_i32 = arith.constant 0 : i32
    %c0_i32_0 = arith.constant 0 : i32
    %c0_i32_1 = arith.constant 0 : i32
    return %c0_i32, %c0_i32_0 : i32, i32
  }
  func.func @transform_1(%arg0: i32) -> (i32, i32) {
    %c0_i32 = arith.constant 0 : i32
    %c0_i32_0 = arith.constant 0 : i32
    return %c0_i32, %arg0 : i32, i32
  }
  func.func @transform_2(%arg0: i32) -> (i32, i32) {
    %c0_i32 = arith.constant 0 : i32
    %c0_i32_0 = arith.constant 0 : i32
    return %c0_i32, %arg0 : i32, i32
  }
  func.func @transform_3(%arg0: i32) -> (i32, i32) {
    %c0_i32 = arith.constant 0 : i32
    %c0_i32_0 = arith.constant 0 : i32
    return %c0_i32, %arg0 : i32, i32
  }
}

</mosaic_0001>

<llo_original>
// kernel: keyed_decoder_forward.3
$region0: #{keyed_decoder_forward.3}
  #allocation0 [shape = 'u32[]', space=smem, size = 0x4, offset = 0x4, fixed_abs, tag = 'smem constant byte address 0x4 - core index']
  #allocation1 [shape = 'u32[144,128]{1,0:T(1,128)}', space=vmem, size = 0x12000, scoped, tag = 'internal scratch']
  %s0 = inlined_call_operand.vmem [shape: bf16[8,128], index: 0, kind: input, shape index: {}]
  %s1 = inlined_call_operand.vmem [shape: bf16[128,512], index: 1, kind: input, shape index: {}]
  %s2 = inlined_call_operand.vmem [shape: f32[1,512], index: 2, kind: input, shape index: {}]
  %s3 = inlined_call_operand.vmem [shape: f32[8,512], index: 3, kind: output, shape index: {}]
  %s4 = sld [smem:[#allocation0]]
  $region22: #{keyed_decoder_forward.3} parent=0
    _
  %s6 = ssub.s32 1, %s4
  %s7 = scalar_select 0, %s6, %s4
  // Predicated region
  $region2: #{keyed_decoder_forward.3} parent=0 // pred_check
    _
  $region3: #{keyed_decoder_forward.3} parent=0 // pred_check_branch
    %9 = sbr.rel (0) target = $region5
  $region4: #{keyed_decoder_forward.3} parent=0 // pred_region
    _
  $region5: #{keyed_decoder_forward.3} parent=0 // pred_fallthru
    _
  // Predicated region
  $region6: #{keyed_decoder_forward.3} parent=0 // pred_check
    _
  $region7: #{keyed_decoder_forward.3} parent=0 // pred_check_branch
    %11 = sbr.rel (0) target = $region9
  $region8: #{keyed_decoder_forward.3} parent=0 // pred_region
    _
  $region9: #{keyed_decoder_forward.3} parent=0 // pred_fallthru
    _
  // Predicated region
  $region10: #{keyed_decoder_forward.3} parent=0 // pred_check
    _
  $region11: #{keyed_decoder_forward.3} parent=0 // pred_check_branch
    %13 = sbr.rel (0) target = $region13
  $region12: #{keyed_decoder_forward.3} parent=0 // pred_region
    _
  $region13: #{keyed_decoder_forward.3} parent=0 // pred_fallthru
    _
  %v15 = vld [vmem:[%s0] sm:$0xf]
  %v16 = vld [vmem:[%s1] sm:$0xff]
  %v17 = vld [vmem:[%s1 + $0x8] sm:$0xff]
  %v18 = vld [vmem:[%s1 + $0x10] sm:$0xff]
  %v19 = vld [vmem:[%s1 + $0x18] sm:$0xff]
  %v20 = vld [vmem:[%s1 + $0x20] sm:$0xff]
  %v21 = vld [vmem:[%s1 + $0x28] sm:$0xff]
  %v22 = vld [vmem:[%s1 + $0x30] sm:$0xff]
  %v23 = vld [vmem:[%s1 + $0x38] sm:$0xff]
  %v24 = vld [vmem:[%s1 + $0x40] sm:$0xff]
  %v25 = vld [vmem:[%s1 + $0x48] sm:$0xff]
  %v26 = vld [vmem:[%s1 + $0x50] sm:$0xff]
  %v27 = vld [vmem:[%s1 + $0x58] sm:$0xff]
  %v28 = vld [vmem:[%s1 + $0x60] sm:$0xff]
  %v29 = vld [vmem:[%s1 + $0x68] sm:$0xff]
  %v30 = vld [vmem:[%s1 + $0x70] sm:$0xff]
  %v31 = vld [vmem:[%s1 + $0x78] sm:$0xff]
  %v32 = vld [vmem:[%s1 + $0x80] sm:$0xff]
  %v33 = vld [vmem:[%s1 + $0x88] sm:$0xff]
  %v34 = vld [vmem:[%s1 + $0x90] sm:$0xff]
  %v35 = vld [vmem:[%s1 + $0x98] sm:$0xff]
  %v36 = vld [vmem:[%s1 + $0xa0] sm:$0xff]
  %v37 = vld [vmem:[%s1 + $0xa8] sm:$0xff]
  %v38 = vld [vmem:[%s1 + $0xb0] sm:$0xff]
  %v39 = vld [vmem:[%s1 + $0xb8] sm:$0xff]
  %v40 = vld [vmem:[%s1 + $0xc0] sm:$0xff]
  %v41 = vld [vmem:[%s1 + $0xc8] sm:$0xff]
  %v42 = vld [vmem:[%s1 + $0xd0] sm:$0xff]
  %v43 = vld [vmem:[%s1 + $0xd8] sm:$0xff]
  %v44 = vld [vmem:[%s1 + $0xe0] sm:$0xff]
  %v45 = vld [vmem:[%s1 + $0xe8] sm:$0xff]
  %v46 = vld [vmem:[%s1 + $0xf0] sm:$0xff]
  %v47 = vld [vmem:[%s1 + $0xf8] sm:$0xff]
  %v48 = vld [vmem:[%s2] sm:$0xf]
  %v50 = vlaneseq
  %v51 = vshrl.u32 %v50, 7
  %v52 = vsub.s32 0, %v51
  %v53 = vrot.slane %v48, %v52
  %v54 = vlaneseq
  %v55 = vshrl.u32 %v54, 7
  %v56 = vsub.s32 1, %v55
  %v57 = vrot.slane %v48, %v56
  %v58 = vlaneseq
  %v59 = vshrl.u32 %v58, 7
  %v60 = vsub.s32 2, %v59
  %v61 = vrot.slane %v48, %v60
  %v62 = vlaneseq
  %v63 = vshrl.u32 %v62, 7
  %v64 = vsub.s32 3, %v63
  %v65 = vrot.slane %v48, %v64
  %v102 = vunpack.c.l.b16 %v16
  %v103 = vunpack.c.h.b16 %v16
  %v104 = vunpack.c.l.b16 %v17
  %v105 = vunpack.c.h.b16 %v17
  %v106 = vunpack.c.l.b16 %v18
  %v107 = vunpack.c.h.b16 %v18
  %v108 = vunpack.c.l.b16 %v19
  %v109 = vunpack.c.h.b16 %v19
  %v110 = vunpack.c.l.b16 %v20
  %v111 = vunpack.c.h.b16 %v20
  %v112 = vunpack.c.l.b16 %v21
  %v113 = vunpack.c.h.b16 %v21
  %v114 = vunpack.c.l.b16 %v22
  %v115 = vunpack.c.h.b16 %v22
  %v116 = vunpack.c.l.b16 %v23
  %v117 = vunpack.c.h.b16 %v23
  %v118 = vunpack.c.l.b16 %v24
  %v119 = vunpack.c.h.b16 %v24
  %v120 = vunpack.c.l.b16 %v25
  %v121 = vunpack.c.h.b16 %v25
  %v122 = vunpack.c.l.b16 %v26
  %v123 = vunpack.c.h.b16 %v26
  %v124 = vunpack.c.l.b16 %v27
  %v125 = vunpack.c.h.b16 %v27
  %v126 = vunpack.c.l.b16 %v28
  %v127 = vunpack.c.h.b16 %v28
  %v128 = vunpack.c.l.b16 %v29
  %v129 = vunpack.c.h.b16 %v29
  %v130 = vunpack.c.l.b16 %v30
  %v131 = vunpack.c.h.b16 %v30
  %v132 = vunpack.c.l.b16 %v31
  %v133 = vunpack.c.h.b16 %v31
  %v134 = vunpack.c.l.b16 %v32
  %v135 = vunpack.c.h.b16 %v32
  %v136 = vunpack.c.l.b16 %v33
  %v137 = vunpack.c.h.b16 %v33
  %v138 = vunpack.c.l.b16 %v34
  %v139 = vunpack.c.h.b16 %v34
  %v140 = vunpack.c.l.b16 %v35
  %v141 = vunpack.c.h.b16 %v35
  %v142 = vunpack.c.l.b16 %v36
  %v143 = vunpack.c.h.b16 %v36
  %v144 = vunpack.c.l.b16 %v37
  %v145 = vunpack.c.h.b16 %v37
  %v146 = vunpack.c.l.b16 %v38
  %v147 = vunpack.c.h.b16 %v38
  %v148 = vunpack.c.l.b16 %v39
  %v149 = vunpack.c.h.b16 %v39
  %v150 = vunpack.c.l.b16 %v40
  %v151 = vunpack.c.h.b16 %v40
  %v152 = vunpack.c.l.b16 %v41
  %v153 = vunpack.c.h.b16 %v41
  %v154 = vunpack.c.l.b16 %v42
  %v155 = vunpack.c.h.b16 %v42
  %v156 = vunpack.c.l.b16 %v43
  %v157 = vunpack.c.h.b16 %v43
  %v158 = vunpack.c.l.b16 %v44
  %v159 = vunpack.c.h.b16 %v44
  %v160 = vunpack.c.l.b16 %v45
  %v161 = vunpack.c.h.b16 %v45
  %v162 = vunpack.c.l.b16 %v46
  %v163 = vunpack.c.h.b16 %v46
  %v164 = vunpack.c.l.b16 %v47
  %v165 = vunpack.c.h.b16 %v47
  %v166 = vpack.c.b16 %v106, %v102
  %v167 = vpack.c.b16 %v107, %v103
  %v168 = vpack.c.b16 %v108, %v104
  %v169 = vpack.c.b16 %v109, %v105
  %v170 = vpack.c.b16 %v114, %v110
  %v171 = vpack.c.b16 %v115, %v111
  %v172 = vpack.c.b16 %v116, %v112
  %v173 = vpack.c.b16 %v117, %v113
  %v174 = vpack.c.b16 %v122, %v118
  %v175 = vpack.c.b16 %v123, %v119
  %v176 = vpack.c.b16 %v124, %v120
  %v177 = vpack.c.b16 %v125, %v121
  %v178 = vpack.c.b16 %v130, %v126
  %v179 = vpack.c.b16 %v131, %v127
  %v180 = vpack.c.b16 %v132, %v128
  %v181 = vpack.c.b16 %v133, %v129
  %v182 = vpack.c.b16 %v138, %v134
  %v183 = vpack.c.b16 %v139, %v135
  %v184 = vpack.c.b16 %v140, %v136
  %v185 = vpack.c.b16 %v141, %v137
  %v186 = vpack.c.b16 %v146, %v142
  %v187 = vpack.c.b16 %v147, %v143
  %v188 = vpack.c.b16 %v148, %v144
  %v189 = vpack.c.b16 %v149, %v145
  %v190 = vpack.c.b16 %v154, %v150
  %v191 = vpack.c.b16 %v155, %v151
  %v192 = vpack.c.b16 %v156, %v152
  %v193 = vpack.c.b16 %v157, %v153
  %v194 = vpack.c.b16 %v162, %v158
  %v195 = vpack.c.b16 %v163, %v159
  %v196 = vpack.c.b16 %v164, %v160
  %v197 = vpack.c.b16 %v165, %v161
  %230 = vmatprep.subr.bf16.mxu0 %v167
  %231 = vmatpush1.bf16.msra.mxu0 %v166
  %232 = vmatprep.subr.bf16.mxu0 %v171
  %233 = vmatpush1.bf16.msra.mxu0 %v170
  %234 = vmatprep.subr.bf16.mxu0 %v175
  %235 = vmatpush1.bf16.msra.mxu0 %v174
  %236 = vmatprep.subr.bf16.mxu0 %v179
  %237 = vmatpush1.bf16.msra.mxu0 %v178
  %238 = vmatprep.subr.bf16.mxu0 %v183
  %239 = vmatpush1.bf16.msra.mxu0 %v182
  %240 = vmatprep.subr.bf16.mxu0 %v187
  %241 = vmatpush1.bf16.msra.mxu0 %v186
  %242 = vmatprep.subr.bf16.mxu0 %v191
  %243 = vmatpush1.bf16.msra.mxu0 %v190
  %244 = vmatprep.subr.bf16.mxu0 %v195
  %245 = vmatpush1.bf16.msra.mxu0 %v194
  %246 = vmatprep.subr.bf16.mxu0 0
  %247 = vmatpush1.bf16.msra.mxu0 0
  %248 = vmatprep.subr.bf16.mxu0 0
  %249 = vmatpush1.bf16.msra.mxu0 0
  %250 = vmatprep.subr.bf16.mxu0 0
  %251 = vmatpush1.bf16.msra.mxu0 0
  %252 = vmatprep.subr.bf16.mxu0 0
  %253 = vmatpush1.bf16.msra.mxu0 0
  %254 = vmatprep.subr.bf16.mxu0 0
  %255 = vmatpush1.bf16.msra.mxu0 0
  %256 = vmatprep.subr.bf16.mxu0 0
  %257 = vmatpush1.bf16.msra.mxu0 0
  %258 = vmatprep.subr.bf16.mxu0 0
  %259 = vmatpush1.bf16.msra.mxu0 0
  %260 = vmatprep.subr.bf16.mxu0 0
  %261 = vmatpush1.bf16.msra.mxu0 0
  %262 = vmatprep.mubr.bf16.mxu0 0
  %263 = vmatmul.mubr.bf16.gmra.mrb[0].mxu0 %v15
  %v264 = vpop.f32.mrb[0].mxu0
  %v265 = vadd.f32 %v53, %v264
  %v266 = vpop.f32.mrb[0].mxu0
  %v267 = vadd.f32 %v57, %v266
  %v268 = vpop.f32.mrb[0].mxu0
  %v269 = vpop.f32.mrb[0].mxu0
  %270 = vdwg.mxu0
  %271 = vmatprep.subr.bf16.mxu0 %v169
  %272 = vmatpush1.bf16.msra.mxu0 %v168
  %273 = vmatprep.subr.bf16.mxu0 %v173
  %274 = vmatpush1.bf16.msra.mxu0 %v172
  %275 = vmatprep.subr.bf16.mxu0 %v177
  %276 = vmatpush1.bf16.msra.mxu0 %v176
  %277 = vmatprep.subr.bf16.mxu0 %v181
  %278 = vmatpush1.bf16.msra.mxu0 %v180
  %279 = vmatprep.subr.bf16.mxu0 %v185
  %280 = vmatpush1.bf16.msra.mxu0 %v184
  %281 = vmatprep.subr.bf16.mxu0 %v189
  %282 = vmatpush1.bf16.msra.mxu0 %v188
  %283 = vmatprep.subr.bf16.mxu0 %v193
  %284 = vmatpush1.bf16.msra.mxu0 %v192
  %285 = vmatprep.subr.bf16.mxu0 %v197
  %286 = vmatpush1.bf16.msra.mxu0 %v196
  %287 = vmatprep.subr.bf16.mxu0 0
  %288 = vmatpush1.bf16.msra.mxu0 0
  %289 = vmatprep.subr.bf16.mxu0 0
  %290 = vmatpush1.bf16.msra.mxu0 0
  %291 = vmatprep.subr.bf16.mxu0 0
  %292 = vmatpush1.bf16.msra.mxu0 0
  %293 = vmatprep.subr.bf16.mxu0 0
  %294 = vmatpush1.bf16.msra.mxu0 0
  %295 = vmatprep.subr.bf16.mxu0 0
  %296 = vmatpush1.bf16.msra.mxu0 0
  %297 = vmatprep.subr.bf16.mxu0 0
  %298 = vmatpush1.bf16.msra.mxu0 0
  %299 = vmatprep.subr.bf16.mxu0 0
  %300 = vmatpush1.bf16.msra.mxu0 0
  %301 = vmatprep.subr.bf16.mxu0 0
  %302 = vmatpush1.bf16.msra.mxu0 0
  %303 = vmatprep.mubr.bf16.mxu0 0
  %304 = vmatmul.mubr.bf16.gmra.mrb[0].mxu0 %v15
  %v305 = vpop.f32.mrb[0].mxu0
  %v306 = vadd.f32 %v61, %v305
  %v307 = vpop.f32.mrb[0].mxu0
  %v308 = vadd.f32 %v65, %v307
  %v309 = vpop.f32.mrb[0].mxu0
  %v310 = vpop.f32.mrb[0].mxu0
  %311 = vdwg.mxu0
  %s312 = smul.u32 0, 512
  %v313 = vlaneseq
  %v314 = vand.u32 %v313, 127
  %v315 = vadd.s32 %v314, 128
  %v316 = vadd.s32 %v314, 256
  %v317 = vadd.s32 %v314, 384
  %v318 = vstv %s312
  %v319 = vadd.s32 %v318, %v314
  %v320 = vadd.s32 %v318, %v315
  %v321 = vadd.s32 %v318, %v316
  %v322 = vadd.s32 %v318, %v317
  %vm323 = vcmp.lt.s32.totalorder %v319, 500
  %vm324 = vcmp.lt.s32.totalorder %v320, 500
  %vm325 = vcmp.lt.s32.totalorder %v321, 500
  %vm326 = vcmp.lt.s32.totalorder %v322, 500
  %v327 = vsel %vm323, %v265, -1e+30
  %v328 = vsel %vm324, %v267, -1e+30
  %v329 = vsel %vm325, %v306, -1e+30
  %v330 = vsel %vm326, %v308, -1e+30
  %331 = vst [vmem:[%s3] sm:$0xff] %v327
  %332 = vst [vmem:[%s3 + $0x8] sm:$0xff] %v328
  %333 = vst [vmem:[%s3 + $0x10] sm:$0xff] %v329
  %334 = vst [vmem:[%s3 + $0x18] sm:$0xff] %v330
  // Predicated region
  $region14: #{keyed_decoder_forward.3} parent=0 // pred_check
    _
  $region15: #{keyed_decoder_forward.3} parent=0 // pred_check_branch
    %336 = sbr.rel (0) target = $region17
  $region16: #{keyed_decoder_forward.3} parent=0 // pred_region
    _
  $region17: #{keyed_decoder_forward.3} parent=0 // pred_fallthru
    _
  // Predicated region
  $region18: #{keyed_decoder_forward.3} parent=0 // pred_check
    _
  $region19: #{keyed_decoder_forward.3} parent=0 // pred_check_branch
    %338 = sbr.rel (0) target = $region21
  $region20: #{keyed_decoder_forward.3} parent=0 // pred_region
    _
  $region21: #{keyed_decoder_forward.3} parent=0 // pred_fallthru
    _

// kernel: keyed_decoder_forward.2
$region0: #{keyed_decoder_forward.2}
  #allocation0 [shape = 'u32[]', space=smem, size = 0x4, offset = 0x4, fixed_abs, tag = 'smem constant byte address 0x4 - core index']
  #allocation1 [shape = 'u32[144,128]{1,0:T(1,128)}', space=vmem, size = 0x12000, scoped, tag = 'internal scratch']
  %s0 = inlined_call_operand.vmem [shape: f32[8,128], index: 0, kind: input, shape index: {}]
  %s1 = inlined_call_operand.vmem [shape: f32[8,128], index: 1, kind: input, shape index: {}]
  %s2 = inlined_call_operand.vmem [shape: f32[1,128], index: 2, kind: input, shape index: {}]
  %s3 = inlined_call_operand.vmem [shape: f32[1,128], index: 3, kind: input, shape index: {}]
  %s4 = inlined_call_operand.hbm [shape: bf16[128,384], index: 4, kind: input, shape index: {}]
  %s5 = inlined_call_operand.hbm [shape: bf16[128,384], index: 5, kind: input, shape index: {}]
  %s6 = inlined_call_operand.vmem [shape: f32[1,384], index: 6, kind: input, shape index: {}]
  %s7 = inlined_call_operand.vmem [shape: f32[1,384], index: 7, kind: input, shape index: {}]
  %s8 = inlined_call_operand.hbm [shape: bf16[128,512], index: 8, kind: input, shape index: {}]
  %s9 = inlined_call_operand.hbm [shape: bf16[128,384], index: 9, kind: input, shape index: {}]
  %s10 = inlined_call_operand.vmem [shape: f32[1,384], index: 10, kind: input, shape index: {}]
  %s11 = inlined_call_operand.vmem [shape: f32[1,384], index: 11, kind: input, shape index: {}]
  %s12 = inlined_call_operand.vmem [shape: bf16[128,128], index: 12, kind: input, shape index: {}]
  %s13 = inlined_call_operand.vmem [shape: f32[1,128], index: 13, kind: input, shape index: {}]
  %s14 = inlined_call_operand.hbm [shape: f32[8,128], index: 14, kind: output, shape index: {0}]
  %s15 = inlined_call_operand.vmem [shape: bf16[8,128], index: 15, kind: output, shape index: {1}]
  %s16 = inlined_call_operand.hbm [shape: f32[1,128], index: 16, kind: output, shape index: {2}]
  %17 = xla_tuple %s14, %s15, %s16
  %s18 = sld [smem:[#allocation0]]
  $region98: #{keyed_decoder_forward.2} parent=0
    _
  %s20 = ssub.s32 1, %s18
  %s21 = scalar_select 0, %s20, %s18
  $region1: #{keyed_decoder_forward.2} parent=0
    #allocation2 [shape = 'u8[98304]{0}', space=vmem, size = 0x18000, scoped, tag = 'input window, operand 4, single buffered']
    #allocation3 [shape = 's32[1]{0}', space=sflag, size = 0x4, scoped, tag = 'scoped memory for keyed_decoder_forward.2']
    #allocation4 [shape = 's32[1]{0}', space=sflag, size = 0x4, scoped, tag = 'scoped memory for keyed_decoder_forward.2']
    #allocation5 [shape = 'u8[98304]{0}', space=vmem, size = 0x18000, scoped, tag = 'input window, operand 5, single buffered']
    #allocation6 [shape = 's32[1]{0}', space=sflag, size = 0x4, scoped, tag = 'scoped memory for keyed_decoder_forward.2']
    #allocation7 [shape = 'u8[131072]{0}', space=vmem, size = 0x20000, scoped, tag = 'input window, operand 8, single buffered']
    #allocation8 [shape = 'u8[98304]{0}', space=vmem, size = 0x18000, scoped, tag = 'input window, operand 9, single buffered']
    #allocation9 [shape = 's32[1]{0}', space=sflag, size = 0x4, scoped, tag = 'scoped memory for keyed_decoder_forward.2']
    #allocation10 [shape = 'u8[4096]{0}', space=vmem, size = 0x1000, scoped, tag = 'output window, operand 0, single buffered']
    #allocation11 [shape = 'u8[512]{0}', space=vmem, size = 0x400, scoped, tag = 'output window, operand 2, single buffered']
    #allocation12 [shape = 's32[1]{0}', space=sflag, size = 0x4, scoped, tag = 'scoped memory for keyed_decoder_forward.2']
    %22 = vsyncpa [#allocation3], 0
    %23 = vsyncpa [#allocation6], 0
    %24 = vsyncpa [#allocation9], 0
    %25 = vsyncpa [#allocation4], 0
    %26 = vsyncpa [#allocation12], 0
    // Predicated region
    $region2: #{keyed_decoder_forward.2} parent=1 // pred_check
      _
    $region3: #{keyed_decoder_forward.2} parent=1 // pred_check_branch
      %28 = sbr.rel (0) target = $region5
    $region4: #{keyed_decoder_forward.2} parent=1 // pred_region
      _
    $region5: #{keyed_decoder_forward.2} parent=1 // pred_fallthru
      _
    // Predicated region
    $region6: #{keyed_decoder_forward.2} parent=1 // pred_check
      _
    $region7: #{keyed_decoder_forward.2} parent=1 // pred_check_branch
      %30 = sbr.rel (0) target = $region9
    $region8: #{keyed_decoder_forward.2} parent=1 // pred_region
      _
    $region9: #{keyed_decoder_forward.2} parent=1 // pred_fallthru
      _
    // Predicated region
    $region10: #{keyed_decoder_forward.2} parent=1 // pred_check
      _
    $region11: #{keyed_decoder_forward.2} parent=1 // pred_check_branch
      %32 = sbr.rel (0) target = $region13
    $region12: #{keyed_decoder_forward.2} parent=1 // pred_region
      _
    $region13: #{keyed_decoder_forward.2} parent=1 // pred_fallthru
      _
    // Predicated region
    $region14: #{keyed_decoder_forward.2} parent=1 // pred_check
      _
    $region15: #{keyed_decoder_forward.2} parent=1 // pred_check_branch
      %34 = sbr.rel (0) target = $region17
    $region16: #{keyed_decoder_forward.2} parent=1 // pred_region
      _
    $region17: #{keyed_decoder_forward.2} parent=1 // pred_fallthru
      _
    // Predicated region
    $region18: #{keyed_decoder_forward.2} parent=1 // pred_check
      _
    $region19: #{keyed_decoder_forward.2} parent=1 // pred_check_branch
      %36 = sbr.rel (0) target = $region21
    $region20: #{keyed_decoder_forward.2} parent=1 // pred_region
      %s38 = ssub.s32 3072, 3072
      %39 = vsyncadd [#allocation3], %s38
      %s40 = sshll.u32 [#allocation2], 4
      %s41 = int_to_ptr.vmem [resolvable:$true] %s40
      %46 = dma.hbm_to_vmem [thread:$0]  %s4, 3072, %s41, [#allocation3], 192, 192, 12
    $region21: #{keyed_decoder_forward.2} parent=1 // pred_fallthru
      _
    // Predicated region
    $region22: #{keyed_decoder_forward.2} parent=1 // pred_check
      _
    $region23: #{keyed_decoder_forward.2} parent=1 // pred_check_branch
      %48 = sbr.rel (0) target = $region25
    $region24: #{keyed_decoder_forward.2} parent=1 // pred_region
      %s50 = ssub.s32 3072, 3072
      %51 = vsyncadd [#allocation6], %s50
      %s52 = sshll.u32 [#allocation5], 4
      %s53 = int_to_ptr.vmem [resolvable:$true] %s52
      %58 = dma.hbm_to_vmem [thread:$0]  %s5, 3072, %s53, [#allocation6], 192, 192, 12
    $region25: #{keyed_decoder_forward.2} parent=1 // pred_fallthru
      _
    // Predicated region
    $region26: #{keyed_decoder_forward.2} parent=1 // pred_check
      _
    $region27: #{keyed_decoder_forward.2} parent=1 // pred_check_branch
      %60 = sbr.rel (0) target = $region29
    $region28: #{keyed_decoder_forward.2} parent=1 // pred_region
      _
    $region29: #{keyed_decoder_forward.2} parent=1 // pred_fallthru
      _
    // Predicated region
    $region30: #{keyed_decoder_forward.2} parent=1 // pred_check
      _
    $region31: #{keyed_decoder_forward.2} parent=1 // pred_check_branch
      %62 = sbr.rel (0) target = $region33
    $region32: #{keyed_decoder_forward.2} parent=1 // pred_region
      _
    $region33: #{keyed_decoder_forward.2} parent=1 // pred_fallthru
      _
    // Predicated region
    $region34: #{keyed_decoder_forward.2} parent=1 // pred_check
      _
    $region35: #{keyed_decoder_forward.2} parent=1 // pred_check_branch
      %64 = sbr.rel (0) target = $region37
    $region36: #{keyed_decoder_forward.2} parent=1 // pred_region
      %s66 = ssub.s32 4096, 4096
      %67 = vsyncadd [#allocation6], %s66
      %s68 = sshll.u32 [#allocation7], 4
      %s69 = int_to_ptr.vmem [resolvable:$true] %s68
      %74 = dma.hbm_to_vmem [thread:$0]  %s8, 4096, %s69, [#allocation6], 256, 256, 16
    $region37: #{keyed_decoder_forward.2} parent=1 // pred_fallthru
      _
    // Predicated region
    $region38: #{keyed_decoder_forward.2} parent=1 // pred_check
      _
    $region39: #{keyed_decoder_forward.2} parent=1 // pred_check_branch
      %76 = sbr.rel (0) target = $region41
    $region40: #{keyed_decoder_forward.2} parent=1 // pred_region
      %s78 = ssub.s32 3072, 3072
      %79 = vsyncadd [#allocation9], %s78
      %s80 = sshll.u32 [#allocation8], 4
      %s81 = int_to_ptr.vmem [resolvable:$true] %s80
      %86 = dma.hbm_to_vmem [thread:$0]  %s9, 3072, %s81, [#allocation9], 192, 192, 12
    $region41: #{keyed_decoder_forward.2} parent=1 // pred_fallthru
      _
    // Predicated region
    $region42: #{keyed_decoder_forward.2} parent=1 // pred_check
      _
    $region43: #{keyed_decoder_forward.2} parent=1 // pred_check_branch
      %88 = sbr.rel (0) target = $region45
    $region44: #{keyed_decoder_forward.2} parent=1 // pred_region
      _
    $region45: #{keyed_decoder_forward.2} parent=1 // pred_fallthru
      _
    // Predicated region
    $region46: #{keyed_decoder_forward.2} parent=1 // pred_check
      _
    $region47: #{keyed_decoder_forward.2} parent=1 // pred_check_branch
      %90 = sbr.rel (0) target = $region49
    $region48: #{keyed_decoder_forward.2} parent=1 // pred_region
      _
    $region49: #{keyed_decoder_forward.2} parent=1 // pred_fallthru
      _
    // Predicated region
    $region50: #{keyed_decoder_forward.2} parent=1 // pred_check
      _
    $region51: #{keyed_decoder_forward.2} parent=1 // pred_check_branch
      %92 = sbr.rel (0) target = $region53
    $region52: #{keyed_decoder_forward.2} parent=1 // pred_region
      _
    $region53: #{keyed_decoder_forward.2} parent=1 // pred_fallthru
      _
    // Predicated region
    $region54: #{keyed_decoder_forward.2} parent=1 // pred_check
      _
    $region55: #{keyed_decoder_forward.2} parent=1 // pred_check_branch
      %94 = sbr.rel (0) target = $region57
    $region56: #{keyed_decoder_forward.2} parent=1 // pred_region
      _
    $region57: #{keyed_decoder_forward.2} parent=1 // pred_fallthru
      _
    // Predicated region
    $region58: #{keyed_decoder_forward.2} parent=1 // pred_check
      _
    $region59: #{keyed_decoder_forward.2} parent=1 // pred_check_branch
      %96 = sbr.rel (0) target = $region61
    $region60: #{keyed_decoder_forward.2} parent=1 // pred_region
      %97 = dma.done [#allocation3], 3072
    $region61: #{keyed_decoder_forward.2} parent=1 // pred_fallthru
      _
    // Predicated region
    $region62: #{keyed_decoder_forward.2} parent=1 // pred_check
      _
    $region63: #{keyed_decoder_forward.2} parent=1 // pred_check_branch
      %99 = sbr.rel (0) target = $region65
    $region64: #{keyed_decoder_forward.2} parent=1 // pred_region
      %100 = dma.done [#allocation6], 3072
    $region65: #{keyed_decoder_forward.2} parent=1 // pred_fallthru
      _
    // Predicated region
    $region66: #{keyed_decoder_forward.2} parent=1 // pred_check
      _
    $region67: #{keyed_decoder_forward.2} parent=1 // pred_check_branch
      %102 = sbr.rel (0) target = $region69
    $region68: #{keyed_decoder_forward.2} parent=1 // pred_region
      %103 = dma.done [#allocation6], 4096
    $region69: #{keyed_decoder_forward.2} parent=1 // pred_fallthru
      _
    // Predicated region
    $region70: #{keyed_decoder_forward.2} parent=1 // pred_check
      _
    $region71: #{keyed_decoder_forward.2} parent=1 // pred_check_branch
      %105 = sbr.rel (0) target = $region73
    $region72: #{keyed_decoder_forward.2} parent=1 // pred_region
      %106 = dma.done [#allocation9], 3072
    $region73: #{keyed_decoder_forward.2} parent=1 // pred_fallthru
      _
    %v108 = vld [vmem:[%s0] sm:$0xff]
    %v109 = vpack.c.bf16 %v108, %v108
    %v110 = vld [vmem:[%s1] sm:$0xff]
    %v111 = vld [vmem:[#allocation2] sm:$0xff]
    %v112 = vld [vmem:[#allocation2 + $0x8] sm:$0xf]
    %v113 = vld [vmem:[#allocation2 + $0xc] sm:$0xff]
    %v114 = vld [vmem:[#allocation2 + $0x14] sm:$0xf]
    %v115 = vld [vmem:[#allocation2 + $0x18] sm:$0xff]
    %v116 = vld [vmem:[#allocation2 + $0x20] sm:$0xf]
    %v117 = vld [vmem:[#allocation2 + $0x24] sm:$0xff]
    %v118 = vld [vmem:[#allocation2 + $0x2c] sm:$0xf]
    %v119 = vld [vmem:[#allocation2 + $0x30] sm:$0xff]
    %v120 = vld [vmem:[#allocation2 + $0x38] sm:$0xf]
    %v121 = vld [vmem:[#allocation2 + $0x3c] sm:$0xff]
    %v122 = vld [vmem:[#allocation2 + $0x44] sm:$0xf]
    %v123 = vld [vmem:[#allocation2 + $0x48] sm:$0xff]
    %v124 = vld [vmem:[#allocation2 + $0x50] sm:$0xf]
    %v125 = vld [vmem:[#allocation2 + $0x54] sm:$0xff]
    %v126 = vld [vmem:[#allocation2 + $0x5c] sm:$0xf]
    %v127 = vld [vmem:[#allocation2 + $0x60] sm:$0xff]
    %v128 = vld [vmem:[#allocation2 + $0x68] sm:$0xf]
    %v129 = vld [vmem:[#allocation2 + $0x6c] sm:$0xff]
    %v130 = vld [vmem:[#allocation2 + $0x74] sm:$0xf]
    %v131 = vld [vmem:[#allocation2 + $0x78] sm:$0xff]
    %v132 = vld [vmem:[#allocation2 + $0x80] sm:$0xf]
    %v133 = vld [vmem:[#allocation2 + $0x84] sm:$0xff]
    %v134 = vld [vmem:[#allocation2 + $0x8c] sm:$0xf]
    %v135 = vld [vmem:[#allocation2 + $0x90] sm:$0xff]
    %v136 = vld [vmem:[#allocation2 + $0x98] sm:$0xf]
    %v137 = vld [vmem:[#allocation2 + $0x9c] sm:$0xff]
    %v138 = vld [vmem:[#allocation2 + $0xa4] sm:$0xf]
    %v139 = vld [vmem:[#allocation2 + $0xa8] sm:$0xff]
    %v140 = vld [vmem:[#allocation2 + $0xb0] sm:$0xf]
    %v141 = vld [vmem:[#allocation2 + $0xb4] sm:$0xff]
    %v142 = vld [vmem:[#allocation2 + $0xbc] sm:$0xf]
    %v143 = vld [vmem:[%s6] sm:$0x7]
    %v145 = vlaneseq
    %v146 = vshrl.u32 %v145, 7
    %v147 = vsub.s32 0, %v146
    %v148 = vrot.slane %v143, %v147
    %v149 = vlaneseq
    %v150 = vshrl.u32 %v149, 7
    %v151 = vsub.s32 1, %v150
    %v152 = vrot.slane %v143, %v151
    %v153 = vlaneseq
    %v154 = vshrl.u32 %v153, 7
    %v155 = vsub.s32 2, %v154
    %v156 = vrot.slane %v143, %v155
    %v192 = vunpack.c.l.b16 %v111
    %v193 = vunpack.c.h.b16 %v111
    %v194 = vunpack.c.l.b16 %v112
    %v195 = vunpack.c.l.b16 %v113
    %v196 = vunpack.c.h.b16 %v113
    %v197 = vunpack.c.l.b16 %v114
    %v198 = vunpack.c.l.b16 %v115
    %v199 = vunpack.c.h.b16 %v115
    %v200 = vunpack.c.l.b16 %v116
    %v201 = vunpack.c.l.b16 %v117
    %v202 = vunpack.c.h.b16 %v117
    %v203 = vunpack.c.l.b16 %v118
    %v204 = vunpack.c.l.b16 %v119
    %v205 = vunpack.c.h.b16 %v119
    %v206 = vunpack.c.l.b16 %v120
    %v207 = vunpack.c.l.b16 %v121
    %v208 = vunpack.c.h.b16 %v121
    %v209 = vunpack.c.l.b16 %v122
    %v210 = vunpack.c.l.b16 %v123
    %v211 = vunpack.c.h.b16 %v123
    %v212 = vunpack.c.l.b16 %v124
    %v213 = vunpack.c.l.b16 %v125
    %v214 = vunpack.c.h.b16 %v125
    %v215 = vunpack.c.l.b16 %v126
    %v216 = vunpack.c.l.b16 %v127
    %v217 = vunpack.c.h.b16 %v127
    %v218 = vunpack.c.l.b16 %v128
    %v219 = vunpack.c.l.b16 %v129
    %v220 = vunpack.c.h.b16 %v129
    %v221 = vunpack.c.l.b16 %v130
    %v222 = vunpack.c.l.b16 %v131
    %v223 = vunpack.c.h.b16 %v131
    %v224 = vunpack.c.l.b16 %v132
    %v225 = vunpack.c.l.b16 %v133
    %v226 = vunpack.c.h.b16 %v133
    %v227 = vunpack.c.l.b16 %v134
    %v228 = vunpack.c.l.b16 %v135
    %v229 = vunpack.c.h.b16 %v135
    %v230 = vunpack.c.l.b16 %v136
    %v231 = vunpack.c.l.b16 %v137
    %v232 = vunpack.c.h.b16 %v137
    %v233 = vunpack.c.l.b16 %v138
    %v234 = vunpack.c.l.b16 %v139
    %v235 = vunpack.c.h.b16 %v139
    %v236 = vunpack.c.l.b16 %v140
    %v237 = vunpack.c.l.b16 %v141
    %v238 = vunpack.c.h.b16 %v141
    %v239 = vunpack.c.l.b16 %v142
    %v240 = vpack.c.b16 %v195, %v192
    %v241 = vpack.c.b16 %v196, %v193
    %v242 = vpack.c.b16 %v197, %v194
    %v243 = vpack.c.b16 %v201, %v198
    %v244 = vpack.c.b16 %v202, %v199
    %v245 = vpack.c.b16 %v203, %v200
    %v246 = vpack.c.b16 %v207, %v204
    %v247 = vpack.c.b16 %v208, %v205
    %v248 = vpack.c.b16 %v209, %v206
    %v249 = vpack.c.b16 %v213, %v210
    %v250 = vpack.c.b16 %v214, %v211
    %v251 = vpack.c.b16 %v215, %v212
    %v252 = vpack.c.b16 %v219, %v216
    %v253 = vpack.c.b16 %v220, %v217
    %v254 = vpack.c.b16 %v221, %v218
    %v255 = vpack.c.b16 %v225, %v222
    %v256 = vpack.c.b16 %v226, %v223
    %v257 = vpack.c.b16 %v227, %v224
    %v258 = vpack.c.b16 %v231, %v228
    %v259 = vpack.c.b16 %v232, %v229
    %v260 = vpack.c.b16 %v233, %v230
    %v261 = vpack.c.b16 %v237, %v234
    %v262 = vpack.c.b16 %v238, %v235
    %v263 = vpack.c.b16 %v239, %v236
    %288 = vmatprep.subr.bf16.mxu0 %v241
    %289 = vmatpush1.bf16.msra.mxu0 %v240
    %290 = vmatprep.subr.bf16.mxu0 %v244
    %291 = vmatpush1.bf16.msra.mxu0 %v243
    %292 = vmatprep.subr.bf16.mxu0 %v247
    %293 = vmatpush1.bf16.msra.mxu0 %v246
    %294 = vmatprep.subr.bf16.mxu0 %v250
    %295 = vmatpush1.bf16.msra.mxu0 %v249
    %296 = vmatprep.subr.bf16.mxu0 %v253
    %297 = vmatpush1.bf16.msra.mxu0 %v252
    %298 = vmatprep.subr.bf16.mxu0 %v256
    %299 = vmatpush1.bf16.msra.mxu0 %v255
    %300 = vmatprep.subr.bf16.mxu0 %v259
    %301 = vmatpush1.bf16.msra.mxu0 %v258
    %302 = vmatprep.subr.bf16.mxu0 %v262
    %303 = vmatpush1.bf16.msra.mxu0 %v261
    %304 = vmatprep.subr.bf16.mxu0 0
    %305 = vmatpush1.bf16.msra.mxu0 0
    %306 = vmatprep.subr.bf16.mxu0 0
    %307 = vmatpush1.bf16.msra.mxu0 0
    %308 = vmatprep.subr.bf16.mxu0 0
    %309 = vmatpush1.bf16.msra.mxu0 0
    %310 = vmatprep.subr.bf16.mxu0 0
    %311 = vmatpush1.bf16.msra.mxu0 0
    %312 = vmatprep.subr.bf16.mxu0 0
    %313 = vmatpush1.bf16.msra.mxu0 0
    %314 = vmatprep.subr.bf16.mxu0 0
    %315 = vmatpush1.bf16.msra.mxu0 0
    %316 = vmatprep.subr.bf16.mxu0 0
    %317 = vmatpush1.bf16.msra.mxu0 0
    %318 = vmatprep.subr.bf16.mxu0 0
    %319 = vmatpush1.bf16.msra.mxu0 0
    %320 = vmatprep.mubr.bf16.mxu0 0
    %321 = vmatmul.mubr.bf16.gmra.mrb[0].mxu0 %v109
    %v322 = vpop.f32.mrb[0].mxu0
    %v323 = vadd.f32 %v148, %v322
    %v324 = vpop.f32.mrb[0].mxu0
    %v325 = vadd.f32 %v152, %v324
    %v326 = vpop.f32.mrb[0].mxu0
    %v327 = vpop.f32.mrb[0].mxu0
    %328 = vdwg.mxu0
    %329 = vmatprep.subr.bf16.mxu0 0
    %330 = vmatpush1.bf16.msra.mxu0 %v242
    %331 = vmatprep.subr.bf16.mxu0 0
    %332 = vmatpush1.bf16.msra.mxu0 %v245
    %333 = vmatprep.subr.bf16.mxu0 0
    %334 = vmatpush1.bf16.msra.mxu0 %v248
    %335 = vmatprep.subr.bf16.mxu0 0
    %336 = vmatpush1.bf16.msra.mxu0 %v251
    %337 = vmatprep.subr.bf16.mxu0 0
    %338 = vmatpush1.bf16.msra.mxu0 %v254
    %339 = vmatprep.subr.bf16.mxu0 0
    %340 = vmatpush1.bf16.msra.mxu0 %v257
    %341 = vmatprep.subr.bf16.mxu0 0
    %342 = vmatpush1.bf16.msra.mxu0 %v260
    %343 = vmatprep.subr.bf16.mxu0 0
    %344 = vmatpush1.bf16.msra.mxu0 %v263
    %345 = vmatprep.subr.bf16.mxu0 0
    %346 = vmatpush1.bf16.msra.mxu0 0
    %347 = vmatprep.subr.bf16.mxu0 0
    %348 = vmatpush1.bf16.msra.mxu0 0
    %349 = vmatprep.subr.bf16.mxu0 0
    %350 = vmatpush1.bf16.msra.mxu0 0
    %351 = vmatprep.subr.bf16.mxu0 0
    %352 = vmatpush1.bf16.msra.mxu0 0
    %353 = vmatprep.subr.bf16.mxu0 0
    %354 = vmatpush1.bf16.msra.mxu0 0
    %355 = vmatprep.subr.bf16.mxu0 0
    %356 = vmatpush1.bf16.msra.mxu0 0
    %357 = vmatprep.subr.bf16.mxu0 0
    %358 = vmatpush1.bf16.msra.mxu0 0
    %359 = vmatprep.subr.bf16.mxu0 0
    %360 = vmatpush1.bf16.msra.mxu0 0
    %361 = vmatprep.mubr.bf16.mxu0 0
    %362 = vmatmul.mubr.bf16.gmra.mrb[0].mxu0 %v109
    %v363 = vpop.f32.mrb[0].mxu0
    %v364 = vadd.f32 %v156, %v363
    %v365 = vpop.f32.mrb[0].mxu0
    %v366 = vpop.f32.mrb[0].mxu0
    %v367 = vpop.f32.mrb[0].mxu0
    %368 = vdwg.mxu0
    %v369 = vpack.c.bf16 %v110, %v110
    %v370 = vld [vmem:[#allocation5] sm:$0xff]
    %v371 = vld [vmem:[#allocation5 + $0x8] sm:$0xf]
    %v372 = vld [vmem:[#allocation5 + $0xc] sm:$0xff]
    %v373 = vld [vmem:[#allocation5 + $0x14] sm:$0xf]
    %v374 = vld [vmem:[#allocation5 + $0x18] sm:$0xff]
    %v375 = vld [vmem:[#allocation5 + $0x20] sm:$0xf]
    %v376 = vld [vmem:[#allocation5 + $0x24] sm:$0xff]
    %v377 = vld [vmem:[#allocation5 + $0x2c] sm:$0xf]
    %v378 = vld [vmem:[#allocation5 + $0x30] sm:$0xff]
    %v379 = vld [vmem:[#allocation5 + $0x38] sm:$0xf]
    %v380 = vld [vmem:[#allocation5 + $0x3c] sm:$0xff]
    %v381 = vld [vmem:[#allocation5 + $0x44] sm:$0xf]
    %v382 = vld [vmem:[#allocation5 + $0x48] sm:$0xff]
    %v383 = vld [vmem:[#allocation5 + $0x50] sm:$0xf]
    %v384 = vld [vmem:[#allocation5 + $0x54] sm:$0xff]
    %v385 = vld [vmem:[#allocation5 + $0x5c] sm:$0xf]
    %v386 = vld [vmem:[#allocation5 + $0x60] sm:$0xff]
    %v387 = vld [vmem:[#allocation5 + $0x68] sm:$0xf]
    %v388 = vld [vmem:[#allocation5 + $0x6c] sm:$0xff]
    %v389 = vld [vmem:[#allocation5 + $0x74] sm:$0xf]
    %v390 = vld [vmem:[#allocation5 + $0x78] sm:$0xff]
    %v391 = vld [vmem:[#allocation5 + $0x80] sm:$0xf]
    %v392 = vld [vmem:[#allocation5 + $0x84] sm:$0xff]
    %v393 = vld [vmem:[#allocation5 + $0x8c] sm:$0xf]
    %v394 = vld [vmem:[#allocation5 + $0x90] sm:$0xff]
    %v395 = vld [vmem:[#allocation5 + $0x98] sm:$0xf]
    %v396 = vld [vmem:[#allocation5 + $0x9c] sm:$0xff]
    %v397 = vld [vmem:[#allocation5 + $0xa4] sm:$0xf]
    %v398 = vld [vmem:[#allocation5 + $0xa8] sm:$0xff]
    %v399 = vld [vmem:[#allocation5 + $0xb0] sm:$0xf]
    %v400 = vld [vmem:[#allocation5 + $0xb4] sm:$0xff]
    %v401 = vld [vmem:[#allocation5 + $0xbc] sm:$0xf]
    %v402 = vld [vmem:[%s7] sm:$0x7]
    %v404 = vlaneseq
    %v405 = vshrl.u32 %v404, 7
    %v406 = vsub.s32 0, %v405
    %v407 = vrot.slane %v402, %v406
    %v408 = vlaneseq
    %v409 = vshrl.u32 %v408, 7
    %v410 = vsub.s32 1, %v409
    %v411 = vrot.slane %v402, %v410
    %v412 = vlaneseq
    %v413 = vshrl.u32 %v412, 7
    %v414 = vsub.s32 2, %v413
    %v415 = vrot.slane %v402, %v414
    %v451 = vunpack.c.l.b16 %v370
    %v452 = vunpack.c.h.b16 %v370
    %v453 = vunpack.c.l.b16 %v371
    %v454 = vunpack.c.l.b16 %v372
    %v455 = vunpack.c.h.b16 %v372
    %v456 = vunpack.c.l.b16 %v373
    %v457 = vunpack.c.l.b16 %v374
    %v458 = vunpack.c.h.b16 %v374
    %v459 = vunpack.c.l.b16 %v375
    %v460 = vunpack.c.l.b16 %v376
    %v461 = vunpack.c.h.b16 %v376
    %v462 = vunpack.c.l.b16 %v377
    %v463 = vunpack.c.l.b16 %v378
    %v464 = vunpack.c.h.b16 %v378
    %v465 = vunpack.c.l.b16 %v379
    %v466 = vunpack.c.l.b16 %v380
    %v467 = vunpack.c.h.b16 %v380
    %v468 = vunpack.c.l.b16 %v381
    %v469 = vunpack.c.l.b16 %v382
    %v470 = vunpack.c.h.b16 %v382
    %v471 = vunpack.c.l.b16 %v383
    %v472 = vunpack.c.l.b16 %v384
    %v473 = vunpack.c.h.b16 %v384
    %v474 = vunpack.c.l.b16 %v385
    %v475 = vunpack.c.l.b16 %v386
    %v476 = vunpack.c.h.b16 %v386
    %v477 = vunpack.c.l.b16 %v387
    %v478 = vunpack.c.l.b16 %v388
    %v479 = vunpack.c.h.b16 %v388
    %v480 = vunpack.c.l.b16 %v389
    %v481 = vunpack.c.l.b16 %v390
    %v482 = vunpack.c.h.b16 %v390
    %v483 = vunpack.c.l.b16 %v391
    %v484 = vunpack.c.l.b16 %v392
    %v485 = vunpack.c.h.b16 %v392
    %v486 = vunpack.c.l.b16 %v393
    %v487 = vunpack.c.l.b16 %v394
    %v488 = vunpack.c.h.b16 %v394
    %v489 = vunpack.c.l.b16 %v395
    %v490 = vunpack.c.l.b16 %v396
    %v491 = vunpack.c.h.b16 %v396
    %v492 = vunpack.c.l.b16 %v397
    %v493 = vunpack.c.l.b16 %v398
    %v494 = vunpack.c.h.b16 %v398
    %v495 = vunpack.c.l.b16 %v399
    %v496 = vunpack.c.l.b16 %v400
    %v497 = vunpack.c.h.b16 %v400
    %v498 = vunpack.c.l.b16 %v401
    %v499 = vpack.c.b16 %v454, %v451
    %v500 = vpack.c.b16 %v455, %v452
    %v501 = vpack.c.b16 %v456, %v453
    %v502 = vpack.c.b16 %v460, %v457
    %v503 = vpack.c.b16 %v461, %v458
    %v504 = vpack.c.b16 %v462, %v459
    %v505 = vpack.c.b16 %v466, %v463
    %v506 = vpack.c.b16 %v467, %v464
    %v507 = vpack.c.b16 %v468, %v465
    %v508 = vpack.c.b16 %v472, %v469
    %v509 = vpack.c.b16 %v473, %v470
    %v510 = vpack.c.b16 %v474, %v471
    %v511 = vpack.c.b16 %v478, %v475
    %v512 = vpack.c.b16 %v479, %v476
    %v513 = vpack.c.b16 %v480, %v477
    %v514 = vpack.c.b16 %v484, %v481
    %v515 = vpack.c.b16 %v485, %v482
    %v516 = vpack.c.b16 %v486, %v483
    %v517 = vpack.c.b16 %v490, %v487
    %v518 = vpack.c.b16 %v491, %v488
    %v519 = vpack.c.b16 %v492, %v489
    %v520 = vpack.c.b16 %v496, %v493
    %v521 = vpack.c.b16 %v497, %v494
    %v522 = vpack.c.b16 %v498, %v495
    %547 = vmatprep.subr.bf16.mxu0 %v500
    %548 = vmatpush1.bf16.msra.mxu0 %v499
    %549 = vmatprep.subr.bf16.mxu0 %v503
    %550 = vmatpush1.bf16.msra.mxu0 %v502
    %551 = vmatprep.subr.bf16.mxu0 %v506
    %552 = vmatpush1.bf16.msra.mxu0 %v505
    %553 = vmatprep.subr.bf16.mxu0 %v509
    %554 = vmatpush1.bf16.msra.mxu0 %v508
    %555 = vmatprep.subr.bf16.mxu0 %v512
    %556 = vmatpush1.bf16.msra.mxu0 %v511
    %557 = vmatprep.subr.bf16.mxu0 %v515
    %558 = vmatpush1.bf16.msra.mxu0 %v514
    %559 = vmatprep.subr.bf16.mxu0 %v518
    %560 = vmatpush1.bf16.msra.mxu0 %v517
    %561 = vmatprep.subr.bf16.mxu0 %v521
    %562 = vmatpush1.bf16.msra.mxu0 %v520
    %563 = vmatprep.subr.bf16.mxu0 0
    %564 = vmatpush1.bf16.msra.mxu0 0
    %565 = vmatprep.subr.bf16.mxu0 0
    %566 = vmatpush1.bf16.msra.mxu0 0
    %567 = vmatprep.subr.bf16.mxu0 0
    %568 = vmatpush1.bf16.msra.mxu0 0
    %569 = vmatprep.subr.bf16.mxu0 0
    %570 = vmatpush1.bf16.msra.mxu0 0
    %571 = vmatprep.subr.bf16.mxu0 0
    %572 = vmatpush1.bf16.msra.mxu0 0
    %573 = vmatprep.subr.bf16.mxu0 0
    %574 = vmatpush1.bf16.msra.mxu0 0
    %575 = vmatprep.subr.bf16.mxu0 0
    %576 = vmatpush1.bf16.msra.mxu0 0
    %577 = vmatprep.subr.bf16.mxu0 0
    %578 = vmatpush1.bf16.msra.mxu0 0
    %579 = vmatprep.mubr.bf16.mxu0 0
    %580 = vmatmul.mubr.bf16.gmra.mrb[0].mxu0 %v369
    %v581 = vpop.f32.mrb[0].mxu0
    %v582 = vadd.f32 %v407, %v581
    %v583 = vpop.f32.mrb[0].mxu0
    %v584 = vadd.f32 %v411, %v583
    %v585 = vpop.f32.mrb[0].mxu0
    %v586 = vpop.f32.mrb[0].mxu0
    %587 = vdwg.mxu0
    %588 = vmatprep.subr.bf16.mxu0 0
    %589 = vmatpush1.bf16.msra.mxu0 %v501
    %590 = vmatprep.subr.bf16.mxu0 0
    %591 = vmatpush1.bf16.msra.mxu0 %v504
    %592 = vmatprep.subr.bf16.mxu0 0
    %593 = vmatpush1.bf16.msra.mxu0 %v507
    %594 = vmatprep.subr.bf16.mxu0 0
    %595 = vmatpush1.bf16.msra.mxu0 %v510
    %596 = vmatprep.subr.bf16.mxu0 0
    %597 = vmatpush1.bf16.msra.mxu0 %v513
    %598 = vmatprep.subr.bf16.mxu0 0
    %599 = vmatpush1.bf16.msra.mxu0 %v516
    %600 = vmatprep.subr.bf16.mxu0 0
    %601 = vmatpush1.bf16.msra.mxu0 %v519
    %602 = vmatprep.subr.bf16.mxu0 0
    %603 = vmatpush1.bf16.msra.mxu0 %v522
    %604 = vmatprep.subr.bf16.mxu0 0
    %605 = vmatpush1.bf16.msra.mxu0 0
    %606 = vmatprep.subr.bf16.mxu0 0
    %607 = vmatpush1.bf16.msra.mxu0 0
    %608 = vmatprep.subr.bf16.mxu0 0
    %609 = vmatpush1.bf16.msra.mxu0 0
    %610 = vmatprep.subr.bf16.mxu0 0
    %611 = vmatpush1.bf16.msra.mxu0 0
    %612 = vmatprep.subr.bf16.mxu0 0
    %613 = vmatpush1.bf16.msra.mxu0 0
    %614 = vmatprep.subr.bf16.mxu0 0
    %615 = vmatpush1.bf16.msra.mxu0 0
    %616 = vmatprep.subr.bf16.mxu0 0
    %617 = vmatpush1.bf16.msra.mxu0 0
    %618 = vmatprep.subr.bf16.mxu0 0
    %619 = vmatpush1.bf16.msra.mxu0 0
    %620 = vmatprep.mubr.bf16.mxu0 0
    %621 = vmatmul.mubr.bf16.gmra.mrb[0].mxu0 %v369
    %v622 = vpop.f32.mrb[0].mxu0
    %v623 = vadd.f32 %v415, %v622
    %v624 = vpop.f32.mrb[0].mxu0
    %v625 = vpop.f32.mrb[0].mxu0
    %v626 = vpop.f32.mrb[0].mxu0
    %627 = vdwg.mxu0
    %v628 = vadd.f32 %v323, %v582
    %v629 = vxor.u32 %v628, 2147483648
    %v630 = vmul.f32 %v629, 1.442695
    %v631 = vpow.pop %v630
    %v632 = vadd.f32 %v631, 1.0
    %v633 = vrcp.pop %v632
    %v634 = vmul.f32 1.0, %v633
    %v635 = vadd.f32 %v325, %v584
    %v636 = vxor.u32 %v635, 2147483648
    %v637 = vmul.f32 %v636, 1.442695
    %v638 = vpow.pop %v637
    %v639 = vadd.f32 %v638, 1.0
    %v640 = vrcp.pop %v639
    %v641 = vmul.f32 1.0, %v640
    %v642 = vmul.f32 %v634, %v623
    %v643 = vadd.f32 %v364, %v642
    %v644 = vtanh.pop %v643
    %v645 = vsub.f32 1.0, %v641
    %v646 = vmul.f32 %v645, %v644
    %v647 = vmul.f32 %v641, %v110
    %v648 = vadd.f32 %v646, %v647
    %v649 = vld [vmem:[%s2] sm:$0x1]
    %v650 = vpack.c.bf16 %v649, %v649
    %v651 = vld [vmem:[%s3] sm:$0x1]
    %v652 = vld [vmem:[#allocation7] sm:$0xff]
    %v653 = vld [vmem:[#allocation7 + $0x8] sm:$0xff]
    %v654 = vld [vmem:[#allocation7 + $0x10] sm:$0xff]
    %v655 = vld [vmem:[#allocation7 + $0x18] sm:$0xff]
    %v656 = vld [vmem:[#allocation7 + $0x20] sm:$0xff]
    %v657 = vld [vmem:[#allocation7 + $0x28] sm:$0xff]
    %v658 = vld [vmem:[#allocation7 + $0x30] sm:$0xff]
    %v659 = vld [vmem:[#allocation7 + $0x38] sm:$0xff]
    %v660 = vld [vmem:[#allocation7 + $0x40] sm:$0xff]
    %v661 = vld [vmem:[#allocation7 + $0x48] sm:$0xff]
    %v662 = vld [vmem:[#allocation7 + $0x50] sm:$0xff]
    %v663 = vld [vmem:[#allocation7 + $0x58] sm:$0xff]
    %v664 = vld [vmem:[#allocation7 + $0x60] sm:$0xff]
    %v665 = vld [vmem:[#allocation7 + $0x68] sm:$0xff]
    %v666 = vld [vmem:[#allocation7 + $0x70] sm:$0xff]
    %v667 = vld [vmem:[#allocation7 + $0x78] sm:$0xff]
    %v668 = vld [vmem:[#allocation7 + $0x80] sm:$0xff]
    %v669 = vld [vmem:[#allocation7 + $0x88] sm:$0xff]
    %v670 = vld [vmem:[#allocation7 + $0x90] sm:$0xff]
    %v671 = vld [vmem:[#allocation7 + $0x98] sm:$0xff]
    %v672 = vld [vmem:[#allocation7 + $0xa0] sm:$0xff]
    %v673 = vld [vmem:[#allocation7 + $0xa8] sm:$0xff]
    %v674 = vld [vmem:[#allocation7 + $0xb0] sm:$0xff]
    %v675 = vld [vmem:[#allocation7 + $0xb8] sm:$0xff]
    %v676 = vld [vmem:[#allocation7 + $0xc0] sm:$0xff]
    %v677 = vld [vmem:[#allocation7 + $0xc8] sm:$0xff]
    %v678 = vld [vmem:[#allocation7 + $0xd0] sm:$0xff]
    %v679 = vld [vmem:[#allocation7 + $0xd8] sm:$0xff]
    %v680 = vld [vmem:[#allocation7 + $0xe0] sm:$0xff]
    %v681 = vld [vmem:[#allocation7 + $0xe8] sm:$0xff]
    %v682 = vld [vmem:[#allocation7 + $0xf0] sm:$0xff]
    %v683 = vld [vmem:[#allocation7 + $0xf8] sm:$0xff]
    %v716 = vunpack.c.l.b16 %v652
    %v717 = vunpack.c.h.b16 %v652
    %v718 = vunpack.c.l.b16 %v653
    %v719 = vunpack.c.h.b16 %v653
    %v720 = vunpack.c.l.b16 %v654
    %v721 = vunpack.c.h.b16 %v654
    %v722 = vunpack.c.l.b16 %v655
    %v723 = vunpack.c.h.b16 %v655
    %v724 = vunpack.c.l.b16 %v656
    %v725 = vunpack.c.h.b16 %v656
    %v726 = vunpack.c.l.b16 %v657
    %v727 = vunpack.c.h.b16 %v657
    %v728 = vunpack.c.l.b16 %v658
    %v729 = vunpack.c.h.b16 %v658
    %v730 = vunpack.c.l.b16 %v659
    %v731 = vunpack.c.h.b16 %v659
    %v732 = vunpack.c.l.b16 %v660
    %v733 = vunpack.c.h.b16 %v660
    %v734 = vunpack.c.l.b16 %v661
    %v735 = vunpack.c.h.b16 %v661
    %v736 = vunpack.c.l.b16 %v662
    %v737 = vunpack.c.h.b16 %v662
    %v738 = vunpack.c.l.b16 %v663
    %v739 = vunpack.c.h.b16 %v663
    %v740 = vunpack.c.l.b16 %v664
    %v741 = vunpack.c.h.b16 %v664
    %v742 = vunpack.c.l.b16 %v665
    %v743 = vunpack.c.h.b16 %v665
    %v744 = vunpack.c.l.b16 %v666
    %v745 = vunpack.c.h.b16 %v666
    %v746 = vunpack.c.l.b16 %v667
    %v747 = vunpack.c.h.b16 %v667
    %v748 = vunpack.c.l.b16 %v668
    %v749 = vunpack.c.h.b16 %v668
    %v750 = vunpack.c.l.b16 %v669
    %v751 = vunpack.c.h.b16 %v669
    %v752 = vunpack.c.l.b16 %v670
    %v753 = vunpack.c.h.b16 %v670
    %v754 = vunpack.c.l.b16 %v671
    %v755 = vunpack.c.h.b16 %v671
    %v756 = vunpack.c.l.b16 %v672
    %v757 = vunpack.c.h.b16 %v672
    %v758 = vunpack.c.l.b16 %v673
    %v759 = vunpack.c.h.b16 %v673
    %v760 = vunpack.c.l.b16 %v674
    %v761 = vunpack.c.h.b16 %v674
    %v762 = vunpack.c.l.b16 %v675
    %v763 = vunpack.c.h.b16 %v675
    %v764 = vunpack.c.l.b16 %v676
    %v765 = vunpack.c.h.b16 %v676
    %v766 = vunpack.c.l.b16 %v677
    %v767 = vunpack.c.h.b16 %v677
    %v768 = vunpack.c.l.b16 %v678
    %v769 = vunpack.c.h.b16 %v678
    %v770 = vunpack.c.l.b16 %v679
    %v771 = vunpack.c.h.b16 %v679
    %v772 = vunpack.c.l.b16 %v680
    %v773 = vunpack.c.h.b16 %v680
    %v774 = vunpack.c.l.b16 %v681
    %v775 = vunpack.c.h.b16 %v681
    %v776 = vunpack.c.l.b16 %v682
    %v777 = vunpack.c.h.b16 %v682
    %v778 = vunpack.c.l.b16 %v683
    %v779 = vunpack.c.h.b16 %v683
    %v780 = vpack.c.b16 %v720, %v716
    %v781 = vpack.c.b16 %v721, %v717
    %v782 = vpack.c.b16 %v722, %v718
    %v783 = vpack.c.b16 %v723, %v719
    %v784 = vpack.c.b16 %v728, %v724
    %v785 = vpack.c.b16 %v729, %v725
    %v786 = vpack.c.b16 %v730, %v726
    %v787 = vpack.c.b16 %v731, %v727
    %v788 = vpack.c.b16 %v736, %v732
    %v789 = vpack.c.b16 %v737, %v733
    %v790 = vpack.c.b16 %v738, %v734
    %v791 = vpack.c.b16 %v739, %v735
    %v792 = vpack.c.b16 %v744, %v740
    %v793 = vpack.c.b16 %v745, %v741
    %v794 = vpack.c.b16 %v746, %v742
    %v795 = vpack.c.b16 %v747, %v743
    %v796 = vpack.c.b16 %v752, %v748
    %v797 = vpack.c.b16 %v753, %v749
    %v798 = vpack.c.b16 %v754, %v750
    %v799 = vpack.c.b16 %v755, %v751
    %v800 = vpack.c.b16 %v760, %v756
    %v801 = vpack.c.b16 %v761, %v757
    %v802 = vpack.c.b16 %v762, %v758
    %v803 = vpack.c.b16 %v763, %v759
    %v804 = vpack.c.b16 %v768, %v764
    %v805 = vpack.c.b16 %v769, %v765
    %v806 = vpack.c.b16 %v770, %v766
    %v807 = vpack.c.b16 %v771, %v767
    %v808 = vpack.c.b16 %v776, %v772
    %v809 = vpack.c.b16 %v777, %v773
    %v810 = vpack.c.b16 %v778, %v774
    %v811 = vpack.c.b16 %v779, %v775
    %844 = vmatprep.subr.bf16.mxu0 %v781
    %845 = vmatpush1.bf16.msra.mxu0 %v780
    %846 = vmatprep.subr.bf16.mxu0 %v785
    %847 = vmatpush1.bf16.msra.mxu0 %v784
    %848 = vmatprep.subr.bf16.mxu0 %v789
    %849 = vmatpush1.bf16.msra.mxu0 %v788
    %850 = vmatprep.subr.bf16.mxu0 %v793
    %851 = vmatpush1.bf16.msra.mxu0 %v792
    %852 = vmatprep.subr.bf16.mxu0 %v797
    %853 = vmatpush1.bf16.msra.mxu0 %v796
    %854 = vmatprep.subr.bf16.mxu0 %v801
    %855 = vmatpush1.bf16.msra.mxu0 %v800
    %856 = vmatprep.subr.bf16.mxu0 %v805
    %857 = vmatpush1.bf16.msra.mxu0 %v804
    %858 = vmatprep.subr.bf16.mxu0 %v809
    %859 = vmatpush1.bf16.msra.mxu0 %v808
    %860 = vmatprep.subr.bf16.mxu0 0
    %861 = vmatpush1.bf16.msra.mxu0 0
    %862 = vmatprep.subr.bf16.mxu0 0
    %863 = vmatpush1.bf16.msra.mxu0 0
    %864 = vmatprep.subr.bf16.mxu0 0
    %865 = vmatpush1.bf16.msra.mxu0 0
    %866 = vmatprep.subr.bf16.mxu0 0
    %867 = vmatpush1.bf16.msra.mxu0 0
    %868 = vmatprep.subr.bf16.mxu0 0
    %869 = vmatpush1.bf16.msra.mxu0 0
    %870 = vmatprep.subr.bf16.mxu0 0
    %871 = vmatpush1.bf16.msra.mxu0 0
    %872 = vmatprep.subr.bf16.mxu0 0
    %873 = vmatpush1.bf16.msra.mxu0 0
    %874 = vmatprep.subr.bf16.mxu0 0
    %875 = vmatpush1.bf16.msra.mxu0 0
    %876 = vmatprep.mubr.bf16.mxu0 0
    %877 = vmatmul.mubr.bf16.gmra.mrb[0].mxu0 %v650
    %v878 = vpop.f32.mrb[0].mxu0
    %v879 = vadd.f32 0.0, %v878
    %v880 = vpop.f32.mrb[0].mxu0
    %v881 = vadd.f32 0.0, %v880
    %v882 = vpop.f32.mrb[0].mxu0
    %v883 = vpop.f32.mrb[0].mxu0
    %884 = vdwg.mxu0
    %885 = vmatprep.subr.bf16.mxu0 %v783
    %886 = vmatpush1.bf16.msra.mxu0 %v782
    %887 = vmatprep.subr.bf16.mxu0 %v787
    %888 = vmatpush1.bf16.msra.mxu0 %v786
    %889 = vmatprep.subr.bf16.mxu0 %v791
    %890 = vmatpush1.bf16.msra.mxu0 %v790
    %891 = vmatprep.subr.bf16.mxu0 %v795
    %892 = vmatpush1.bf16.msra.mxu0 %v794
    %893 = vmatprep.subr.bf16.mxu0 %v799
    %894 = vmatpush1.bf16.msra.mxu0 %v798
    %895 = vmatprep.subr.bf16.mxu0 %v803
    %896 = vmatpush1.bf16.msra.mxu0 %v802
    %897 = vmatprep.subr.bf16.mxu0 %v807
    %898 = vmatpush1.bf16.msra.mxu0 %v806
    %899 = vmatprep.subr.bf16.mxu0 %v811
    %900 = vmatpush1.bf16.msra.mxu0 %v810
    %901 = vmatprep.subr.bf16.mxu0 0
    %902 = vmatpush1.bf16.msra.mxu0 0
    %903 = vmatprep.subr.bf16.mxu0 0
    %904 = vmatpush1.bf16.msra.mxu0 0
    %905 = vmatprep.subr.bf16.mxu0 0
    %906 = vmatpush1.bf16.msra.mxu0 0
    %907 = vmatprep.subr.bf16.mxu0 0
    %908 = vmatpush1.bf16.msra.mxu0 0
    %909 = vmatprep.subr.bf16.mxu0 0
    %910 = vmatpush1.bf16.msra.mxu0 0
    %911 = vmatprep.subr.bf16.mxu0 0
    %912 = vmatpush1.bf16.msra.mxu0 0
    %913 = vmatprep.subr.bf16.mxu0 0
    %914 = vmatpush1.bf16.msra.mxu0 0
    %915 = vmatprep.subr.bf16.mxu0 0
    %916 = vmatpush1.bf16.msra.mxu0 0
    %917 = vmatprep.mubr.bf16.mxu0 0
    %918 = vmatmul.mubr.bf16.gmra.mrb[0].mxu0 %v650
    %v919 = vpop.f32.mrb[0].mxu0
    %v920 = vadd.f32 0.0, %v919
    %v921 = vpop.f32.mrb[0].mxu0
    %v922 = vadd.f32 0.0, %v921
    %v923 = vpop.f32.mrb[0].mxu0
    %v924 = vpop.f32.mrb[0].mxu0
    %925 = vdwg.mxu0
    %v926 = vpack.c.bf16 %v651, %v651
    %v927 = vld [vmem:[#allocation8] sm:$0xff]
    %v928 = vld [vmem:[#allocation8 + $0x8] sm:$0xf]
    %v929 = vld [vmem:[#allocation8 + $0xc] sm:$0xff]
    %v930 = vld [vmem:[#allocation8 + $0x14] sm:$0xf]
    %v931 = vld [vmem:[#allocation8 + $0x18] sm:$0xff]
    %v932 = vld [vmem:[#allocation8 + $0x20] sm:$0xf]
    %v933 = vld [vmem:[#allocation8 + $0x24] sm:$0xff]
    %v934 = vld [vmem:[#allocation8 + $0x2c] sm:$0xf]
    %v935 = vld [vmem:[#allocation8 + $0x30] sm:$0xff]
    %v936 = vld [vmem:[#allocation8 + $0x38] sm:$0xf]
    %v937 = vld [vmem:[#allocation8 + $0x3c] sm:$0xff]
    %v938 = vld [vmem:[#allocation8 + $0x44] sm:$0xf]
    %v939 = vld [vmem:[#allocation8 + $0x48] sm:$0xff]
    %v940 = vld [vmem:[#allocation8 + $0x50] sm:$0xf]
    %v941 = vld [vmem:[#allocation8 + $0x54] sm:$0xff]
    %v942 = vld [vmem:[#allocation8 + $0x5c] sm:$0xf]
    %v943 = vld [vmem:[#allocation8 + $0x60] sm:$0xff]
    %v944 = vld [vmem:[#allocation8 + $0x68] sm:$0xf]
    %v945 = vld [vmem:[#allocation8 + $0x6c] sm:$0xff]
    %v946 = vld [vmem:[#allocation8 + $0x74] sm:$0xf]
    %v947 = vld [vmem:[#allocation8 + $0x78] sm:$0xff]
    %v948 = vld [vmem:[#allocation8 + $0x80] sm:$0xf]
    %v949 = vld [vmem:[#allocation8 + $0x84] sm:$0xff]
    %v950 = vld [vmem:[#allocation8 + $0x8c] sm:$0xf]
    %v951 = vld [vmem:[#allocation8 + $0x90] sm:$0xff]
    %v952 = vld [vmem:[#allocation8 + $0x98] sm:$0xf]
    %v953 = vld [vmem:[#allocation8 + $0x9c] sm:$0xff]
    %v954 = vld [vmem:[#allocation8 + $0xa4] sm:$0xf]
    %v955 = vld [vmem:[#allocation8 + $0xa8] sm:$0xff]
    %v956 = vld [vmem:[#allocation8 + $0xb0] sm:$0xf]
    %v957 = vld [vmem:[#allocation8 + $0xb4] sm:$0xff]
    %v958 = vld [vmem:[#allocation8 + $0xbc] sm:$0xf]
    %v959 = vld [vmem:[%s11] sm:$0x7]
    %v992 = vunpack.c.l.b16 %v927
    %v993 = vunpack.c.h.b16 %v927
    %v994 = vunpack.c.l.b16 %v928
    %v995 = vunpack.c.l.b16 %v929
    %v996 = vunpack.c.h.b16 %v929
    %v997 = vunpack.c.l.b16 %v930
    %v998 = vunpack.c.l.b16 %v931
    %v999 = vunpack.c.h.b16 %v931
    %v1000 = vunpack.c.l.b16 %v932
    %v1001 = vunpack.c.l.b16 %v933
    %v1002 = vunpack.c.h.b16 %v933
    %v1003 = vunpack.c.l.b16 %v934
    %v1004 = vunpack.c.l.b16 %v935
    %v1005 = vunpack.c.h.b16 %v935
    %v1006 = vunpack.c.l.b16 %v936
    %v1007 = vunpack.c.l.b16 %v937
    %v1008 = vunpack.c.h.b16 %v937
    %v1009 = vunpack.c.l.b16 %v938
    %v1010 = vunpack.c.l.b16 %v939
    %v1011 = vunpack.c.h.b16 %v939
    %v1012 = vunpack.c.l.b16 %v940
    %v1013 = vunpack.c.l.b16 %v941
    %v1014 = vunpack.c.h.b16 %v941
    %v1015 = vunpack.c.l.b16 %v942
    %v1016 = vunpack.c.l.b16 %v943
    %v1017 = vunpack.c.h.b16 %v943
    %v1018 = vunpack.c.l.b16 %v944
    %v1019 = vunpack.c.l.b16 %v945
    %v1020 = vunpack.c.h.b16 %v945
    %v1021 = vunpack.c.l.b16 %v946
    %v1022 = vunpack.c.l.b16 %v947
    %v1023 = vunpack.c.h.b16 %v947
    %v1024 = vunpack.c.l.b16 %v948
    %v1025 = vunpack.c.l.b16 %v949
    %v1026 = vunpack.c.h.b16 %v949
    %v1027 = vunpack.c.l.b16 %v950
    %v1028 = vunpack.c.l.b16 %v951
    %v1029 = vunpack.c.h.b16 %v951
    %v1030 = vunpack.c.l.b16 %v952
    %v1031 = vunpack.c.l.b16 %v953
    %v1032 = vunpack.c.h.b16 %v953
    %v1033 = vunpack.c.l.b16 %v954
    %v1034 = vunpack.c.l.b16 %v955
    %v1035 = vunpack.c.h.b16 %v955
    %v1036 = vunpack.c.l.b16 %v956
    %v1037 = vunpack.c.l.b16 %v957
    %v1038 = vunpack.c.h.b16 %v957
    %v1039 = vunpack.c.l.b16 %v958
    %v1040 = vpack.c.b16 %v995, %v992
    %v1041 = vpack.c.b16 %v996, %v993
    %v1042 = vpack.c.b16 %v997, %v994
    %v1043 = vpack.c.b16 %v1001, %v998
    %v1044 = vpack.c.b16 %v1002, %v999
    %v1045 = vpack.c.b16 %v1003, %v1000
    %v1046 = vpack.c.b16 %v1007, %v1004
    %v1047 = vpack.c.b16 %v1008, %v1005
    %v1048 = vpack.c.b16 %v1009, %v1006
    %v1049 = vpack.c.b16 %v1013, %v1010
    %v1050 = vpack.c.b16 %v1014, %v1011
    %v1051 = vpack.c.b16 %v1015, %v1012
    %v1052 = vpack.c.b16 %v1019, %v1016
    %v1053 = vpack.c.b16 %v1020, %v1017
    %v1054 = vpack.c.b16 %v1021, %v1018
    %v1055 = vpack.c.b16 %v1025, %v1022
    %v1056 = vpack.c.b16 %v1026, %v1023
    %v1057 = vpack.c.b16 %v1027, %v1024
    %v1058 = vpack.c.b16 %v1031, %v1028
    %v1059 = vpack.c.b16 %v1032, %v1029
    %v1060 = vpack.c.b16 %v1033, %v1030
    %v1061 = vpack.c.b16 %v1037, %v1034
    %v1062 = vpack.c.b16 %v1038, %v1035
    %v1063 = vpack.c.b16 %v1039, %v1036
    %v1089 = vlaneseq
    %v1090 = vshrl.u32 %v1089, 7
    %v1091 = vsub.s32 0, %v1090
    %v1092 = vrot.slane %v959, %v1091
    %v1093 = vlaneseq
    %v1094 = vshrl.u32 %v1093, 7
    %v1095 = vsub.s32 1, %v1094
    %v1096 = vrot.slane %v959, %v1095
    %v1097 = vlaneseq
    %v1098 = vshrl.u32 %v1097, 7
    %v1099 = vsub.s32 2, %v1098
    %v1100 = vrot.slane %v959, %v1099
    %1104 = vmatprep.subr.bf16.mxu0 %v1041
    %1105 = vmatpush1.bf16.msra.mxu0 %v1040
    %1106 = vmatprep.subr.bf16.mxu0 %v1044
    %1107 = vmatpush1.bf16.msra.mxu0 %v1043
    %1108 = vmatprep.subr.bf16.mxu0 %v1047
    %1109 = vmatpush1.bf16.msra.mxu0 %v1046
    %1110 = vmatprep.subr.bf16.mxu0 %v1050
    %1111 = vmatpush1.bf16.msra.mxu0 %v1049
    %1112 = vmatprep.subr.bf16.mxu0 %v1053
    %1113 = vmatpush1.bf16.msra.mxu0 %v1052
    %1114 = vmatprep.subr.bf16.mxu0 %v1056
    %1115 = vmatpush1.bf16.msra.mxu0 %v1055
    %1116 = vmatprep.subr.bf16.mxu0 %v1059
    %1117 = vmatpush1.bf16.msra.mxu0 %v1058
    %1118 = vmatprep.subr.bf16.mxu0 %v1062
    %1119 = vmatpush1.bf16.msra.mxu0 %v1061
    %1120 = vmatprep.subr.bf16.mxu0 0
    %1121 = vmatpush1.bf16.msra.mxu0 0
    %1122 = vmatprep.subr.bf16.mxu0 0
    %1123 = vmatpush1.bf16.msra.mxu0 0
    %1124 = vmatprep.subr.bf16.mxu0 0
    %1125 = vmatpush1.bf16.msra.mxu0 0
    %1126 = vmatprep.subr.bf16.mxu0 0
    %1127 = vmatpush1.bf16.msra.mxu0 0
    %1128 = vmatprep.subr.bf16.mxu0 0
    %1129 = vmatpush1.bf16.msra.mxu0 0
    %1130 = vmatprep.subr.bf16.mxu0 0
    %1131 = vmatpush1.bf16.msra.mxu0 0
    %1132 = vmatprep.subr.bf16.mxu0 0
    %1133 = vmatpush1.bf16.msra.mxu0 0
    %1134 = vmatprep.subr.bf16.mxu0 0
    %1135 = vmatpush1.bf16.msra.mxu0 0
    %1136 = vmatprep.mubr.bf16.mxu0 0
    %1137 = vmatmul.mubr.bf16.gmra.mrb[0].mxu0 %v926
    %v1138 = vpop.f32.mrb[0].mxu0
    %v1139 = vadd.f32 %v1092, %v1138
    %v1140 = vpop.f32.mrb[0].mxu0
    %v1141 = vadd.f32 %v1096, %v1140
    %v1142 = vpop.f32.mrb[0].mxu0
    %v1143 = vpop.f32.mrb[0].mxu0
    %1144 = vdwg.mxu0
    %1145 = vmatprep.subr.bf16.mxu0 0
    %1146 = vmatpush1.bf16.msra.mxu0 %v1042
    %1147 = vmatprep.subr.bf16.mxu0 0
    %1148 = vmatpush1.bf16.msra.mxu0 %v1045
    %1149 = vmatprep.subr.bf16.mxu0 0
    %1150 = vmatpush1.bf16.msra.mxu0 %v1048
    %1151 = vmatprep.subr.bf16.mxu0 0
    %1152 = vmatpush1.bf16.msra.mxu0 %v1051
    %1153 = vmatprep.subr.bf16.mxu0 0
    %1154 = vmatpush1.bf16.msra.mxu0 %v1054
    %1155 = vmatprep.subr.bf16.mxu0 0
    %1156 = vmatpush1.bf16.msra.mxu0 %v1057
    %1157 = vmatprep.subr.bf16.mxu0 0
    %1158 = vmatpush1.bf16.msra.mxu0 %v1060
    %1159 = vmatprep.subr.bf16.mxu0 0
    %1160 = vmatpush1.bf16.msra.mxu0 %v1063
    %1161 = vmatprep.subr.bf16.mxu0 0
    %1162 = vmatpush1.bf16.msra.mxu0 0
    %1163 = vmatprep.subr.bf16.mxu0 0
    %1164 = vmatpush1.bf16.msra.mxu0 0
    %1165 = vmatprep.subr.bf16.mxu0 0
    %1166 = vmatpush1.bf16.msra.mxu0 0
    %1167 = vmatprep.subr.bf16.mxu0 0
    %1168 = vmatpush1.bf16.msra.mxu0 0
    %1169 = vmatprep.subr.bf16.mxu0 0
    %1170 = vmatpush1.bf16.msra.mxu0 0
    %1171 = vmatprep.subr.bf16.mxu0 0
    %1172 = vmatpush1.bf16.msra.mxu0 0
    %1173 = vmatprep.subr.bf16.mxu0 0
    %1174 = vmatpush1.bf16.msra.mxu0 0
    %1175 = vmatprep.subr.bf16.mxu0 0
    %1176 = vmatpush1.bf16.msra.mxu0 0
    %1177 = vmatprep.mubr.bf16.mxu0 0
    %1178 = vmatmul.mubr.bf16.gmra.mrb[0].mxu0 %v926
    %v1179 = vpop.f32.mrb[0].mxu0
    %v1180 = vadd.f32 %v1100, %v1179
    %v1181 = vpop.f32.mrb[0].mxu0
    %v1182 = vpop.f32.mrb[0].mxu0
    %v1183 = vpop.f32.mrb[0].mxu0
    %1184 = vdwg.mxu0
    %v1185 = vld [vmem:[%s10] sm:$0x7]
    %v1187 = vlaneseq
    %v1188 = vshrl.u32 %v1187, 7
    %v1189 = vsub.s32 0, %v1188
    %v1190 = vrot.slane %v1185, %v1189
    %v1191 = vlaneseq
    %v1192 = vshrl.u32 %v1191, 7
    %v1193 = vsub.s32 1, %v1192
    %v1194 = vrot.slane %v1185, %v1193
    %v1195 = vlaneseq
    %v1196 = vshrl.u32 %v1195, 7
    %v1197 = vsub.s32 2, %v1196
    %v1198 = vrot.slane %v1185, %v1197
    %v1202 = vadd.f32 %v879, %v1190
    %v1203 = vadd.f32 %v881, %v1194
    %v1204 = vadd.f32 %v920, %v1198
    %v1205 = vadd.f32 %v1202, %v1139
    %v1206 = vxor.u32 %v1205, 2147483648
    %v1207 = vmul.f32 %v1206, 1.442695
    %v1208 = vpow.pop %v1207
    %v1209 = vadd.f32 %v1208, 1.0
    %v1210 = vrcp.pop %v1209
    %v1211 = vmul.f32 1.0, %v1210
    %v1212 = vadd.f32 %v1203, %v1141
    %v1213 = vxor.u32 %v1212, 2147483648
    %v1214 = vmul.f32 %v1213, 1.442695
    %v1215 = vpow.pop %v1214
    %v1216 = vadd.f32 %v1215, 1.0
    %v1217 = vrcp.pop %v1216
    %v1218 = vmul.f32 1.0, %v1217
    %v1219 = vmul.f32 %v1211, %v1180
    %v1220 = vadd.f32 %v1204, %v1219
    %v1221 = vtanh.pop %v1220
    %v1222 = vsub.f32 1.0, %v1218
    %v1223 = vmul.f32 %v1222, %v1221
    %v1224 = vmul.f32 %v1218, %v651
    %v1225 = vadd.f32 %v1223, %v1224
    %v1226 = vpack.c.bf16 %v1225, %v1225
    %v1227 = vld [vmem:[%s12] sm:$0xf]
    %v1228 = vld [vmem:[%s12 + $0x4] sm:$0xf]
    %v1229 = vld [vmem:[%s12 + $0x8] sm:$0xf]
    %v1230 = vld [vmem:[%s12 + $0xc] sm:$0xf]
    %v1231 = vld [vmem:[%s12 + $0x10] sm:$0xf]
    %v1232 = vld [vmem:[%s12 + $0x14] sm:$0xf]
    %v1233 = vld [vmem:[%s12 + $0x18] sm:$0xf]
    %v1234 = vld [vmem:[%s12 + $0x1c] sm:$0xf]
    %v1235 = vld [vmem:[%s12 + $0x20] sm:$0xf]
    %v1236 = vld [vmem:[%s12 + $0x24] sm:$0xf]
    %v1237 = vld [vmem:[%s12 + $0x28] sm:$0xf]
    %v1238 = vld [vmem:[%s12 + $0x2c] sm:$0xf]
    %v1239 = vld [vmem:[%s12 + $0x30] sm:$0xf]
    %v1240 = vld [vmem:[%s12 + $0x34] sm:$0xf]
    %v1241 = vld [vmem:[%s12 + $0x38] sm:$0xf]
    %v1242 = vld [vmem:[%s12 + $0x3c] sm:$0xf]
    %v1259 = vunpack.c.l.b16 %v1227
    %v1260 = vunpack.c.l.b16 %v1228
    %v1261 = vunpack.c.l.b16 %v1229
    %v1262 = vunpack.c.l.b16 %v1230
    %v1263 = vunpack.c.l.b16 %v1231
    %v1264 = vunpack.c.l.b16 %v1232
    %v1265 = vunpack.c.l.b16 %v1233
    %v1266 = vunpack.c.l.b16 %v1234
    %v1267 = vunpack.c.l.b16 %v1235
    %v1268 = vunpack.c.l.b16 %v1236
    %v1269 = vunpack.c.l.b16 %v1237
    %v1270 = vunpack.c.l.b16 %v1238
    %v1271 = vunpack.c.l.b16 %v1239
    %v1272 = vunpack.c.l.b16 %v1240
    %v1273 = vunpack.c.l.b16 %v1241
    %v1274 = vunpack.c.l.b16 %v1242
    %v1275 = vpack.c.b16 %v1260, %v1259
    %v1276 = vpack.c.b16 %v1262, %v1261
    %v1277 = vpack.c.b16 %v1264, %v1263
    %v1278 = vpack.c.b16 %v1266, %v1265
    %v1279 = vpack.c.b16 %v1268, %v1267
    %v1280 = vpack.c.b16 %v1270, %v1269
    %v1281 = vpack.c.b16 %v1272, %v1271
    %v1282 = vpack.c.b16 %v1274, %v1273
    %1291 = vmatprep.subr.bf16.mxu0 0
    %1292 = vmatpush1.bf16.msra.mxu0 %v1275
    %1293 = vmatprep.subr.bf16.mxu0 0
    %1294 = vmatpush1.bf16.msra.mxu0 %v1276
    %1295 = vmatprep.subr.bf16.mxu0 0
    %1296 = vmatpush1.bf16.msra.mxu0 %v1277
    %1297 = vmatprep.subr.bf16.mxu0 0
    %1298 = vmatpush1.bf16.msra.mxu0 %v1278
    %1299 = vmatprep.subr.bf16.mxu0 0
    %1300 = vmatpush1.bf16.msra.mxu0 %v1279
    %1301 = vmatprep.subr.bf16.mxu0 0
    %1302 = vmatpush1.bf16.msra.mxu0 %v1280
    %1303 = vmatprep.subr.bf16.mxu0 0
    %1304 = vmatpush1.bf16.msra.mxu0 %v1281
    %1305 = vmatprep.subr.bf16.mxu0 0
    %1306 = vmatpush1.bf16.msra.mxu0 %v1282
    %1307 = vmatprep.subr.bf16.mxu0 0
    %1308 = vmatpush1.bf16.msra.mxu0 0
    %1309 = vmatprep.subr.bf16.mxu0 0
    %1310 = vmatpush1.bf16.msra.mxu0 0
    %1311 = vmatprep.subr.bf16.mxu0 0
    %1312 = vmatpush1.bf16.msra.mxu0 0
    %1313 = vmatprep.subr.bf16.mxu0 0
    %1314 = vmatpush1.bf16.msra.mxu0 0
    %1315 = vmatprep.subr.bf16.mxu0 0
    %1316 = vmatpush1.bf16.msra.mxu0 0
    %1317 = vmatprep.subr.bf16.mxu0 0
    %1318 = vmatpush1.bf16.msra.mxu0 0
    %1319 = vmatprep.subr.bf16.mxu0 0
    %1320 = vmatpush1.bf16.msra.mxu0 0
    %1321 = vmatprep.subr.bf16.mxu0 0
    %1322 = vmatpush1.bf16.msra.mxu0 0
    %1323 = vmatprep.mubr.bf16.mxu0 0
    %1324 = vmatmul.mubr.bf16.gmra.mrb[0].mxu0 %v1226
    %v1325 = vpop.f32.mrb[0].mxu0
    %v1326 = vadd.f32 0.0, %v1325
    %v1327 = vpop.f32.mrb[0].mxu0
    %v1328 = vpop.f32.mrb[0].mxu0
    %v1329 = vpop.f32.mrb[0].mxu0
    %1330 = vdwg.mxu0
    %v1331 = vadd.f32 %v922, %v1326
    %v1332 = vld [vmem:[%s13] sm:$0x1]
    %v1333 = vadd.f32 %v1331, %v1332
    %v1334 = vxor.u32 %v1333, 2147483648
    %v1335 = vmul.f32 %v1334, 1.442695
    %v1336 = vpow.pop %v1335
    %v1337 = vadd.f32 %v1336, 1.0
    %v1338 = vrcp.pop %v1337
    %v1339 = vmul.f32 1.0, %v1338
    %v1340 = vlaneseq
    %v1341 = vshrl.u32 %v1340, 7
    %v1342 = vsub.s32 0, %v1341
    %v1343 = vrot.slane %v1339, %v1342
    %v1344 = vmul.f32 %v1343, %v648
    %1345 = vst [vmem:[#allocation10] sm:$0xff] %v1344
    %v1346 = vpack.c.bf16 %v1344, %v1344
    %1347 = vst [vmem:[%s15] sm:$0xf] %v1346
    %1348 = vst [vmem:[#allocation11] sm:$0x1] %v1225
    // Predicated region
    $region74: #{keyed_decoder_forward.2} parent=1 // pred_check
      _
    $region75: #{keyed_decoder_forward.2} parent=1 // pred_check_branch
      %1350 = sbr.rel (0) target = $region77
    $region76: #{keyed_decoder_forward.2} parent=1 // pred_region
      %s1352 = ssub.s32 128, 128
      %1353 = vsyncadd [#allocation4], %s1352
      %s1355 = sshll.u32 [#allocation10], 4
      %s1356 = int_to_ptr.vmem [resolvable:$true] %s1355
      %1358 = dma.vmem_to_hbm [thread:$0]  %s1356, 128, %s14, [#allocation4]
    $region77: #{keyed_decoder_forward.2} parent=1 // pred_fallthru
      _
    // Predicated region
    $region78: #{keyed_decoder_forward.2} parent=1 // pred_check
      _
    $region79: #{keyed_decoder_forward.2} parent=1 // pred_check_branch
      %1360 = sbr.rel (0) target = $region81
    $region80: #{keyed_decoder_forward.2} parent=1 // pred_region
      _
    $region81: #{keyed_decoder_forward.2} parent=1 // pred_fallthru
      _
    // Predicated region
    $region82: #{keyed_decoder_forward.2} parent=1 // pred_check
      _
    $region83: #{keyed_decoder_forward.2} parent=1 // pred_check_branch
      %1362 = sbr.rel (0) target = $region85
    $region84: #{keyed_decoder_forward.2} parent=1 // pred_region
      %s1364 = ssub.s32 16, 16
      %1365 = vsyncadd [#allocation12], %s1364
      %s1367 = sshll.u32 [#allocation11], 4
      %s1368 = int_to_ptr.vmem [resolvable:$true] %s1367
      %1370 = dma.vmem_to_hbm [thread:$0]  %s1368, 16, %s16, [#allocation12]
    $region85: #{keyed_decoder_forward.2} parent=1 // pred_fallthru
      _
    // Predicated region
    $region86: #{keyed_decoder_forward.2} parent=1 // pred_check
      _
    $region87: #{keyed_decoder_forward.2} parent=1 // pred_check_branch
      %1372 = sbr.rel (0) target = $region89
    $region88: #{keyed_decoder_forward.2} parent=1 // pred_region
      %1373 = dma.done [#allocation4], 128
    $region89: #{keyed_decoder_forward.2} parent=1 // pred_fallthru
      _
    // Predicated region
    $region90: #{keyed_decoder_forward.2} parent=1 // pred_check
      _
    $region91: #{keyed_decoder_forward.2} parent=1 // pred_check_branch
      %1375 = sbr.rel (0) target = $region93
    $region92: #{keyed_decoder_forward.2} parent=1 // pred_region
      _
    $region93: #{keyed_decoder_forward.2} parent=1 // pred_fallthru
      _
    // Predicated region
    $region94: #{keyed_decoder_forward.2} parent=1 // pred_check
      _
    $region95: #{keyed_decoder_forward.2} parent=1 // pred_check_branch
      %1377 = sbr.rel (0) target = $region97
    $region96: #{keyed_decoder_forward.2} parent=1 // pred_region
      %1378 = dma.done [#allocation12], 16
    $region97: #{keyed_decoder_forward.2} parent=1 // pred_fallthru
      _
    %1379 = vsyncpa [#allocation3], 1
    %1380 = vsyncpa [#allocation6], 1
    %1381 = vsyncpa [#allocation9], 1
    %1382 = vsyncpa [#allocation4], 1
    %1383 = vsyncpa [#allocation12], 1

</llo_original>
